<compile_context>
chip_gen: v6e
topology: v6e:2x2x1
jax: 0.10.0
libtpu: 0.0.40
codegen_flags: <defaults>
</compile_context>

<pallas_src>
import functools

import jax
import jax.numpy as jnp
from jax import lax
from jax.experimental import pallas as pl
from jax.experimental.pallas import tpu as pltpu


def _round_up(x, m):
    return ((x + m - 1) // m) * m


def _vmem_limit_bytes():
    # Per-generation sizing: ~48 MiB on v7x (64 MiB physical VMEM),
    # ~96 MiB on v5e / v6e (128 MiB physical VMEM).
    try:
        cap = int(pltpu.get_tpu_info().vmem_capacity_bytes)
    except Exception:
        cap = 64 * 1024 * 1024
    return max(32 * 1024 * 1024, min(cap * 3 // 4, 100 * 1024 * 1024))


# ----------------------------------------------------------------------------
# Fused, edge-tiled kernel: grid = (num_layers, num_edge_tiles)
# ----------------------------------------------------------------------------
def hec_forward_kernel(
        x_ref, ea_ref, src_ref, dst_ref, et_ref, batch_ref,
        w_in_ref, b_in_ref, w_root_ref, b_root_ref,
        fc1_w_ref, fc1_b_ref, fc2_w_ref, fc2_b_ref,
        out_ref,
        h_ref, hb_ref, acc_ref,
        *, hidden: int, relations: int):
    l = pl.program_id(0)
    t = pl.program_id(1)
    n_layers = pl.num_programs(0)
    n_tiles = pl.num_programs(1)

    n_pad, c_max = h_ref.shape
    t_e = ea_ref.shape[0]
    rh = relations * hidden

    # ---- prologue: seed node state / zero the per-layer accumulator --------
    @pl.when(jnp.logical_and(l == 0, t == 0))
    def _():
        h_ref[...] = x_ref[...]                        # x pre-padded (N_pad, C_max)

    @pl.when(t == 0)
    def _():
        hb_ref[...] = h_ref[...].astype(jnp.bfloat16)  # bf16 copy for MXU gathers
        acc_ref[...] = jnp.zeros_like(acc_ref)

    # ---- per-edge-tile message computation ----------------------------------
    src = src_ref[...]                                 # (tE, 1) int32
    et = et_ref[...]                                   # (tE, 1) int32 (pad == relations)

    # gather source-node features via an in-kernel one-hot (no (E,N) slab in HBM)
    src_oh = jnp.where(
        lax.broadcasted_iota(jnp.int32, (t_e, n_pad), 1) == src,
        1.0, 0.0).astype(jnp.bfloat16)                 # (tE, N_pad)
    x_src = jnp.dot(src_oh, hb_ref[...],
                    preferred_element_type=jnp.float32)            # (tE, C_max)

    # fused node+edge per-relation linear: one bf16 MXU pass over K = C_max + D
    xin = jnp.concatenate([x_src, ea_ref[...]], axis=1).astype(jnp.bfloat16)
    stacked = (jnp.dot(xin, w_in_ref[...],
                       preferred_element_type=jnp.float32)
               + b_in_ref[...])                                     # (tE, R*H)

    # relation-select mask built in-kernel from edge_type (f32 VPU work only)
    lane = lax.broadcasted_iota(jnp.int32, (t_e, rh), 1)
    lo = et * hidden
    mask = jnp.where(jnp.logical_and(lane >= lo, lane < lo + hidden), 1.0, 0.0)
    masked = stacked * mask                                         # (tE, R*H)

    # collapse the R relation blocks with VPU adds (keeps the MXU free)
    msg = masked[:, 0:hidden]
    for r in range(1, relations):
        msg = msg + masked[:, r * hidden:(r + 1) * hidden]          # (tE, H)

    # scatter-add messages to target nodes via an in-kernel one-hot^T
    dst_oh_t = jnp.where(
        lax.broadcasted_iota(jnp.int32, (n_pad, t_e), 0) == dst_ref[...],
        1.0, 0.0).astype(jnp.bfloat16)                              # (N_pad, tE)
    acc_ref[...] += jnp.dot(dst_oh_t, msg.astype(jnp.bfloat16),
                            preferred_element_type=jnp.float32)     # (N_pad, H)

    # ---- layer epilogue: root transform, activation, layer hand-off --------
    @pl.when(t == n_tiles - 1)
    def _():
        root = (jnp.dot(hb_ref[...], w_root_ref[...],
                        preferred_element_type=jnp.float32)
                + b_root_ref[...])                                  # (N_pad, H)
        h_new = acc_ref[...] + root
        is_last_layer = l == n_layers - 1
        # ReLU on every layer except the last (JK='last' takes the raw output).
        # TODO(synk): F.dropout is identity at inference; training parity would
        # need pltpu.prng_seed / prng_random_bits here.
        h_act = jnp.where(is_last_layer, h_new, jnp.maximum(h_new, 0.0))
        if c_max == hidden:
            h_ref[...] = h_act
        else:
            h_ref[...] = jnp.concatenate(
                [h_act, jnp.zeros((n_pad, c_max - hidden), h_act.dtype)], axis=1)

        # ---- network head on the final layer: pool + fc1/relu/fc2 ----------
        @pl.when(is_last_layer)
        def _():
            b_pad = out_ref.shape[0]
            pool_oh = jnp.where(
                lax.broadcasted_iota(jnp.int32, (b_pad, n_pad), 0) == batch_ref[...],
                1.0, 0.0).astype(jnp.bfloat16)                      # (B_pad, N_pad)
            pooled = jnp.dot(pool_oh, h_new.astype(jnp.bfloat16),
                             preferred_element_type=jnp.float32)    # (B_pad, H)
            z = jnp.maximum(
                jnp.dot(pooled.astype(jnp.bfloat16), fc1_w_ref[...],
                        preferred_element_type=jnp.float32)
                + fc1_b_ref[...], 0.0)                              # (B_pad, H//2)
            # fc2 has a single output unit: VPU multiply + lane reduce.
            out_ref[...] = (jnp.sum(z * fc2_w_ref[...], axis=-1, keepdims=True)
                            + fc2_b_ref[...])                       # (B_pad, 1)


# ----------------------------------------------------------------------------
# Wrapper: pads / stacks operands, builds the grid, one pallas_call.
# ----------------------------------------------------------------------------
def hec_convnet_forward(x, edge_index, edge_attr, edge_type, node_batch,
                        params, *, num_layers, num_graphs, relations,
                        edge_tile=512):
    n, cin0 = x.shape
    e, d = edge_attr.shape
    hidden = params["convs"][0]["w_node"].shape[2]
    c_max = max(cin0, hidden)
    rh = relations * hidden

    n_pad = _round_up(n, 8)
    b_pad = _round_up(max(num_graphs, 1), 8)
    t_e = min(_round_up(e, 128), _round_up(edge_tile, 128))
    e_pad = _round_up(e, t_e)
    n_tiles = e_pad // t_e

    f32, bf16 = jnp.float32, jnp.bfloat16

    # Padded node operands (extra rows are never gathered / scattered / pooled).
    x_pad = jnp.zeros((n_pad, c_max), f32).at[:n, :cin0].set(x.astype(f32))
    batch_row = jnp.full((1, n_pad), num_graphs, jnp.int32).at[0, :n].set(
        node_batch.astype(jnp.int32))

    # Padded edge operands (pad edges get an out-of-range relation id -> zero mask).
    src, dst = edge_index[0], edge_index[1]
    ea_pad = jnp.zeros((e_pad, d), f32).at[:e, :].set(edge_attr.astype(f32))
    src_col = jnp.zeros((e_pad, 1), jnp.int32).at[:e, 0].set(src.astype(jnp.int32))
    dst_row = jnp.zeros((1, e_pad), jnp.int32).at[0, :e].set(dst.astype(jnp.int32))
    et_col = jnp.full((e_pad, 1), relations, jnp.int32).at[:e, 0].set(
        edge_type.astype(jnp.int32))

    # Per-layer weights stacked along a leading layer axis (layer-0 Cin padded).
    w_in_l, b_in_l, w_root_l, b_root_l = [], [], [], []
    for i in range(num_layers):
        p = params["convs"][i]
        r, ci, hd = p["w_node"].shape
        wn = jnp.zeros((r, c_max, hd), f32).at[:, :ci, :].set(p["w_node"])
        wn_k = jnp.transpose(wn, (1, 0, 2)).reshape(c_max, r * hd)      # (C_max, R*H)
        we_k = jnp.transpose(p["w_edge"], (1, 0, 2)).reshape(d, r * hd)  # (D, R*H)
        w_in_l.append(jnp.concatenate([wn_k, we_k], axis=0))             # (C_max+D, R*H)
        b_in_l.append(p["b_rel"].reshape(1, r * hd))
        w_root_l.append(jnp.zeros((c_max, hd), f32).at[:ci, :].set(p["w_root"]))
        b_root_l.append(p["b_root"].reshape(1, hd))
    w_in = jnp.stack(w_in_l).astype(bf16)       # (L, C_max+D, R*H) bf16
    b_in = jnp.stack(b_in_l).astype(f32)        # (L, 1, R*H)
    w_root = jnp.stack(w_root_l).astype(bf16)   # (L, C_max, H)    bf16
    b_root = jnp.stack(b_root_l).astype(f32)    # (L, 1, H)

    fc1_w = params["fc1_w"].astype(bf16)                     # (H, H//2)
    fc1_b = params["fc1_b"].reshape(1, -1).astype(f32)       # (1, H//2)
    fc2_w = params["fc2_w"].reshape(1, -1).astype(f32)       # (1, H//2) VPU reduce
    fc2_b = params["fc2_b"].reshape(1, 1).astype(f32)        # (1, 1)

    grid = (num_layers, n_tiles)
    in_specs = [
        pl.BlockSpec((n_pad, c_max), lambda l, t: (0, 0)),            # x_pad
        pl.BlockSpec((t_e, d), lambda l, t: (t, 0)),                  # edge_attr
        pl.BlockSpec((t_e, 1), lambda l, t: (t, 0)),                  # src ids
        pl.BlockSpec((1, t_e), lambda l, t: (0, t)),                  # dst ids
        pl.BlockSpec((t_e, 1), lambda l, t: (t, 0)),                  # edge_type
        pl.BlockSpec((1, n_pad), lambda l, t: (0, 0)),                # node_batch
        pl.BlockSpec((None, c_max + d, rh), lambda l, t: (l, 0, 0)),  # w_in
        pl.BlockSpec((None, 1, rh), lambda l, t: (l, 0, 0)),          # b_in
        pl.BlockSpec((None, c_max, hidden), lambda l, t: (l, 0, 0)),  # w_root
        pl.BlockSpec((None, 1, hidden), lambda l, t: (l, 0, 0)),      # b_root
        pl.BlockSpec((hidden, hidden // 2), lambda l, t: (0, 0)),     # fc1_w
        pl.BlockSpec((1, hidden // 2), lambda l, t: (0, 0)),          # fc1_b
        pl.BlockSpec((1, hidden // 2), lambda l, t: (0, 0)),          # fc2_w
        pl.BlockSpec((1, 1), lambda l, t: (0, 0)),                    # fc2_b
    ]
    out_spec = pl.BlockSpec((b_pad, 1), lambda l, t: (0, 0))
    scratch = [
        pltpu.VMEM((n_pad, c_max), f32),    # h (node state, f32)
        pltpu.VMEM((n_pad, c_max), bf16),   # bf16 copy of h for MXU gathers
        pltpu.VMEM((n_pad, hidden), f32),   # per-layer scatter accumulator
    ]

    # Advisory cost estimate for XLA scheduling around the custom call.
    flops = 0
    for _ in range(num_layers):
        flops += n_tiles * (2 * t_e * n_pad * c_max            # gather one-hot
                            + 2 * t_e * (c_max + d) * rh       # fused relation linear
                            + 2 * n_pad * t_e * hidden)        # scatter one-hot
        flops += 2 * n_pad * c_max * hidden                    # root transform
    flops += 2 * b_pad * n_pad * hidden + 2 * b_pad * hidden * (hidden // 2)
    args = [x_pad, ea_pad, src_col, dst_row, et_col, batch_row,
            w_in, b_in, w_root, b_root, fc1_w, fc1_b, fc2_w, fc2_b]
    bytes_accessed = sum(int(a.size) * a.dtype.itemsize for a in args) + b_pad * 4

    out = pl.pallas_call(
        functools.partial(hec_forward_kernel, hidden=hidden, relations=relations),
        out_shape=jax.ShapeDtypeStruct((b_pad, 1), f32),
        grid_spec=pltpu.PrefetchScalarGridSpec(
            num_scalar_prefetch=0,
            grid=grid,
            in_specs=in_specs,
            out_specs=out_spec,
            scratch_shapes=scratch),
        compiler_params=pltpu.CompilerParams(
            # Both axes carry sequential state (h across layers, acc across tiles).
            # TODO(synk): split node rows of the scatter/root stage across cores
            # (a 'parallel' axis with per-core partial accumulators) for v7x's 2nd TC.
            dimension_semantics=("arbitrary", "arbitrary"),
            vmem_limit_bytes=_vmem_limit_bytes()),
        cost_estimate=pl.CostEstimate(flops=int(flops), transcendentals=0,
                                      bytes_accessed=int(bytes_accessed)),
    )(*args)
    return out[:num_graphs, 0]                                        # (B,)


# ----------------------------------------------------------------------------
# Pure-JAX reference (torch-like segment semantics) for a sanity check.
# ----------------------------------------------------------------------------
def reference_forward(x, edge_index, edge_attr, edge_type, node_batch,
                      params, *, num_layers, num_graphs):
    src, dst = edge_index[0], edge_index[1]
    h = x
    for i in range(num_layers):
        p = params["convs"][i]
        x_src = h[src]
        wn = p["w_node"][edge_type]            # (E, Cin, H)
        we = p["w_edge"][edge_type]            # (E, D, H)
        b = p["b_rel"][edge_type]              # (E, H)
        msg = (jnp.einsum("ec,ech->eh", x_src, wn)
               + jnp.einsum("ed,edh->eh", edge_attr, we) + b)
        agg = jax.ops.segment_sum(msg, dst, num_segments=h.shape[0])
        h = agg + h @ p["w_root"] + p["b_root"]
        if i != num_layers - 1:
            h = jax.nn.relu(h)
    pooled = jax.ops.segment_sum(h, node_batch, num_segments=num_graphs)
    z = jax.nn.relu(pooled @ params["fc1_w"] + params["fc1_b"])
    return jnp.squeeze(z @ params["fc2_w"] + params["fc2_b"])


# ----------------------------------------------------------------------------
# Deterministic parameter construction + example run
# ----------------------------------------------------------------------------
def init_params(key, in_channels, hidden, num_layers, dim, relations):
    params = {"convs": []}
    for i in range(num_layers):
        cin = in_channels if i == 0 else hidden
        key, *ks = jax.random.split(key, 6)
        params["convs"].append({
            "w_node": 0.1 * jax.random.normal(ks[0], (relations, cin, hidden), jnp.float32),
            "w_edge": 0.1 * jax.random.normal(ks[1], (relations, dim, hidden), jnp.float32),
            "b_rel":  0.1 * jax.random.normal(ks[2], (relations, hidden), jnp.float32),
            "w_root": 0.1 * jax.random.normal(ks[3], (cin, hidden), jnp.float32),
            "b_root": 0.1 * jax.random.normal(ks[4], (1, hidden), jnp.float32),
        })
    key, k1, k2, k3, k4 = jax.random.split(key, 5)
    params["fc1_w"] = 0.1 * jax.random.normal(k1, (hidden, hidden // 2), jnp.float32)
    params["fc1_b"] = 0.1 * jax.random.normal(k2, (1, hidden // 2), jnp.float32)
    params["fc2_w"] = 0.1 * jax.random.normal(k3, (hidden // 2, 1), jnp.float32)
    params["fc2_b"] = 0.1 * jax.random.normal(k4, (1, 1), jnp.float32)
    return params


if __name__ == "__main__":
    # Small config consistent with the module defaults.
    IN_CH, HIDDEN, NUM_LAYERS, DIM, RELATIONS = 4, 32, 2, 4, 4
    N_NODES, N_EDGES, N_GRAPHS = 24, 48, 2

    key = jax.random.PRNGKey(0)
    k_x, k_s, k_d, k_ea, k_et, k_p = jax.random.split(key, 6)

    x = jax.random.normal(k_x, (N_NODES, IN_CH), jnp.float32)
    src = jax.random.randint(k_s, (N_EDGES,), 0, N_NODES, dtype=jnp.int32)
    dst = jax.random.randint(k_d, (N_EDGES,), 0, N_NODES, dtype=jnp.int32)
    edge_index = jnp.stack([src, dst], axis=0)                       # (2, E)
    edge_attr = jax.random.normal(k_ea, (N_EDGES, DIM), jnp.float32)
    edge_type = jax.random.randint(k_et, (N_EDGES,), 0, RELATIONS, dtype=jnp.int32)
    node_batch = jnp.concatenate([
        jnp.zeros((N_NODES // 2,), jnp.int32),
        jnp.ones((N_NODES - N_NODES // 2,), jnp.int32),
    ])                                                               # (N,)

    params = init_params(k_p, IN_CH, HIDDEN, NUM_LAYERS, DIM, RELATIONS)

    out = hec_convnet_forward(
        x, edge_index, edge_attr, edge_type, node_batch, params,
        num_layers=NUM_LAYERS, num_graphs=N_GRAPHS, relations=RELATIONS)
    jax.block_until_ready(out)
    assert out.shape == (N_GRAPHS,)

    ref = reference_forward(
        x, edge_index, edge_attr, edge_type, node_batch, params,
        num_layers=NUM_LAYERS, num_graphs=N_GRAPHS)
    # bf16 MXU path (weights, gathered h, scattered messages) -> loose tolerance.
    assert jnp.allclose(out, ref, rtol=7e-2, atol=2e-1), (out, ref)

    print("KERNEL_OK")
</pallas_src>

<mosaic_0001>
module attributes {stable_mosaic.version = 11 : i64} {
  func.func @hec_forward_kernel(%arg0: i32, %arg1: i32, %arg2: memref<24x32xf32, #tpu.memory_space<vmem>>, %arg3: memref<128x4xf32, #tpu.memory_space<vmem>>, %arg4: memref<128x1xi32, #tpu.memory_space<vmem>>, %arg5: memref<1x128xi32, #tpu.memory_space<vmem>>, %arg6: memref<128x1xi32, #tpu.memory_space<vmem>>, %arg7: memref<1x24xi32, #tpu.memory_space<vmem>>, %arg8: memref<1x36x128xbf16, #tpu.memory_space<vmem>>, %arg9: memref<1x1x128xf32, #tpu.memory_space<vmem>>, %arg10: memref<1x32x32xbf16, #tpu.memory_space<vmem>>, %arg11: memref<1x1x32xf32, #tpu.memory_space<vmem>>, %arg12: memref<32x16xbf16, #tpu.memory_space<vmem>>, %arg13: memref<1x16xf32, #tpu.memory_space<vmem>>, %arg14: memref<1x16xf32, #tpu.memory_space<vmem>>, %arg15: memref<1x1xf32, #tpu.memory_space<vmem>>, %arg16: memref<8x1xf32, #tpu.memory_space<vmem>>, %arg17: memref<24x32xf32, #tpu.memory_space<vmem>>, %arg18: memref<24x32xbf16, #tpu.memory_space<vmem>>, %arg19: memref<24x32xf32, #tpu.memory_space<vmem>>) attributes {dimension_semantics = [#tpu.dimension_semantics<arbitrary>, #tpu.dimension_semantics<arbitrary>], iteration_bounds = array<i64: 2, 1>, scalar_prefetch = 0 : i64, scratch_operands = 3 : i64, tpu.core_type = #tpu.core_type<tc>, window_params = [{pipeline_mode = #tpu.pipeline_mode<synchronous>, transform_indices = @transform_0, window_bounds = array<i64: 24, 32>}, {transform_indices = @transform_1, window_bounds = array<i64: 128, 4>}, {transform_indices = @transform_2, window_bounds = array<i64: 128, 1>}, {transform_indices = @transform_3, window_bounds = array<i64: 1, 128>}, {transform_indices = @transform_4, window_bounds = array<i64: 128, 1>}, {pipeline_mode = #tpu.pipeline_mode<synchronous>, transform_indices = @transform_5, window_bounds = array<i64: 1, 24>}, {transform_indices = @transform_6, window_bounds = array<i64: 1, 36, 128>}, {transform_indices = @transform_7, window_bounds = array<i64: 1, 1, 128>}, {transform_indices = @transform_8, window_bounds = array<i64: 1, 32, 32>}, {transform_indices = @transform_9, window_bounds = array<i64: 1, 1, 32>}, {pipeline_mode = #tpu.pipeline_mode<synchronous>, transform_indices = @transform_10, window_bounds = array<i64: 32, 16>}, {pipeline_mode = #tpu.pipeline_mode<synchronous>, transform_indices = @transform_11, window_bounds = array<i64: 1, 16>}, {pipeline_mode = #tpu.pipeline_mode<synchronous>, transform_indices = @transform_12, window_bounds = array<i64: 1, 16>}, {pipeline_mode = #tpu.pipeline_mode<synchronous>, transform_indices = @transform_13, window_bounds = array<i64: 1, 1>}, {pipeline_mode = #tpu.pipeline_mode<synchronous>, transform_indices = @transform_14, window_bounds = array<i64: 8, 1>}]} {
    %c0_i32 = arith.constant 0 : i32
    %0 = arith.cmpi eq, %arg0, %c0_i32 : i32
    %c0_i32_0 = arith.constant 0 : i32
    %1 = arith.cmpi eq, %arg1, %c0_i32_0 : i32
    %2 = arith.andi %0, %1 : i1
    %3 = arith.extui %2 : i1 to i32
    %c0_i32_1 = arith.constant 0 : i32
    %4 = arith.cmpi ne, %3, %c0_i32_1 : i32
    scf.if %4 {
      %c0_34 = arith.constant 0 : index
      %c0_35 = arith.constant 0 : index
      %66 = vector.load %arg2[%c0_34, %c0_35] : memref<24x32xf32, #tpu.memory_space<vmem>>, vector<24x32xf32>
      %c0_36 = arith.constant 0 : index
      %c0_37 = arith.constant 0 : index
      %67 = vector.load %arg17[%c0_36, %c0_37] : memref<24x32xf32, #tpu.memory_space<vmem>>, vector<24x32xf32>
      tpu.vector_store %arg17[%c0_36, %c0_37], %66 {strides = array<i32>} : memref<24x32xf32, #tpu.memory_space<vmem>>, vector<24x32xf32>,
    } else {
    }
    %c0_i32_2 = arith.constant 0 : i32
    %5 = arith.cmpi eq, %arg1, %c0_i32_2 : i32
    %6 = arith.extui %5 : i1 to i32
    %c0_i32_3 = arith.constant 0 : i32
    %7 = arith.cmpi ne, %6, %c0_i32_3 : i32
    scf.if %7 {
      %c0_34 = arith.constant 0 : index
      %c0_35 = arith.constant 0 : index
      %66 = vector.load %arg17[%c0_34, %c0_35] : memref<24x32xf32, #tpu.memory_space<vmem>>, vector<24x32xf32>
      %67 = arith.truncf %66 : vector<24x32xf32> to vector<24x32xbf16>
      %c0_36 = arith.constant 0 : index
      %c0_37 = arith.constant 0 : index
      %68 = vector.load %arg18[%c0_36, %c0_37] : memref<24x32xbf16, #tpu.memory_space<vmem>>, vector<24x32xbf16>
      tpu.vector_store %arg18[%c0_36, %c0_37], %67 {strides = array<i32>} : memref<24x32xbf16, #tpu.memory_space<vmem>>, vector<24x32xbf16>,
      %cst_38 = arith.constant 0.000000e+00 : f32
      %69 = vector.broadcast %cst_38 : f32 to vector<24x32xf32>
      %c0_39 = arith.constant 0 : index
      %c0_40 = arith.constant 0 : index
      %70 = vector.load %arg19[%c0_39, %c0_40] : memref<24x32xf32, #tpu.memory_space<vmem>>, vector<24x32xf32>
      tpu.vector_store %arg19[%c0_39, %c0_40], %69 {strides = array<i32>} : memref<24x32xf32, #tpu.memory_space<vmem>>, vector<24x32xf32>,
    } else {
    }
    %c0 = arith.constant 0 : index
    %c0_4 = arith.constant 0 : index
    %8 = vector.load %arg4[%c0, %c0_4] : memref<128x1xi32, #tpu.memory_space<vmem>>, vector<128x1xi32>
    %c0_5 = arith.constant 0 : index
    %c0_6 = arith.constant 0 : index
    %9 = vector.load %arg6[%c0_5, %c0_6] : memref<128x1xi32, #tpu.memory_space<vmem>>, vector<128x1xi32>
    %10 = tpu.iota {dimensions = array<i32: 1>} : vector<128x24xi32>
    %11 = vector.broadcast %8 : vector<128x1xi32> to vector<128x24xi32>
    %12 = arith.cmpi eq, %10, %11 : vector<128x24xi32>
    %cst = arith.constant 1.000000e+00 : f32
    %cst_7 = arith.constant 0.000000e+00 : f32
    %13 = vector.broadcast %cst : f32 to vector<128x24xf32>
    %14 = vector.broadcast %cst_7 : f32 to vector<128x24xf32>
    %15 = arith.select %12, %13, %14 : vector<128x24xi1>, vector<128x24xf32>
    %16 = arith.truncf %15 : vector<128x24xf32> to vector<128x24xbf16>
    %c0_8 = arith.constant 0 : index
    %c0_9 = arith.constant 0 : index
    %17 = vector.load %arg18[%c0_8, %c0_9] : memref<24x32xbf16, #tpu.memory_space<vmem>>, vector<24x32xbf16>
    %cst_10 = arith.constant dense<0.000000e+00> : vector<128x32xf32>
    %18 = tpu.matmul %16, %17, %cst_10 {dimension_numbers = #tpu.dot_dimension_numbers<[1], [0], [0], [1], [0, 0, 1, 1], [], []>} : vector<128x24xbf16>, vector<24x32xbf16>, vector<128x32xf32> -> vector<128x32xf32>
    %c0_11 = arith.constant 0 : index
    %c0_12 = arith.constant 0 : index
    %19 = vector.load %arg3[%c0_11, %c0_12] : memref<128x4xf32, #tpu.memory_space<vmem>>, vector<128x4xf32>
    %20 = tpu.concatenate %18, %19 in 1 : vector<128x32xf32>, vector<128x4xf32> -> vector<128x36xf32>
    %21 = arith.truncf %20 : vector<128x36xf32> to vector<128x36xbf16>
    %c0_13 = arith.constant 0 : index
    %c0_14 = arith.constant 0 : index
    %c0_15 = arith.constant 0 : index
    %22 = vector.load %arg8[%c0_13, %c0_14, %c0_15] : memref<1x36x128xbf16, #tpu.memory_space<vmem>>, vector<1x36x128xbf16>
    %23 = vector.shape_cast %22 : vector<1x36x128xbf16> to vector<36x128xbf16>
    %cst_16 = arith.constant dense<0.000000e+00> : vector<128x128xf32>
    %24 = tpu.matmul %21, %23, %cst_16 {dimension_numbers = #tpu.dot_dimension_numbers<[1], [0], [0], [1], [0, 0, 1, 1], [], []>} : vector<128x36xbf16>, vector<36x128xbf16>, vector<128x128xf32> -> vector<128x128xf32>
    %c0_17 = arith.constant 0 : index
    %c0_18 = arith.constant 0 : index
    %c0_19 = arith.constant 0 : index
    %25 = vector.load %arg9[%c0_17, %c0_18, %c0_19] : memref<1x1x128xf32, #tpu.memory_space<vmem>>, vector<1x1x128xf32>
    %26 = vector.shape_cast %25 : vector<1x1x128xf32> to vector<1x128xf32>
    %27 = vector.broadcast %26 : vector<1x128xf32> to vector<128x128xf32>
    %28 = arith.addf %24, %27 : vector<128x128xf32>
    %29 = tpu.iota {dimensions = array<i32: 1>} : vector<128x128xi32>
    %c32_i32 = arith.constant 32 : i32
    %30 = vector.broadcast %c32_i32 : i32 to vector<128x1xi32>
    %31 = arith.muli %9, %30 : vector<128x1xi32>
    %32 = vector.broadcast %31 : vector<128x1xi32> to vector<128x128xi32>
    %33 = arith.cmpi sge, %29, %32 : vector<128x128xi32>
    %c32_i32_20 = arith.constant 32 : i32
    %34 = vector.broadcast %c32_i32_20 : i32 to vector<128x1xi32>
    %35 = arith.addi %31, %34 : vector<128x1xi32>
    %36 = vector.broadcast %35 : vector<128x1xi32> to vector<128x128xi32>
    %37 = arith.cmpi slt, %29, %36 : vector<128x128xi32>
    %38 = arith.andi %33, %37 : vector<128x128xi1>
    %cst_21 = arith.constant 1.000000e+00 : f32
    %cst_22 = arith.constant 0.000000e+00 : f32
    %39 = vector.broadcast %cst_21 : f32 to vector<128x128xf32>
    %40 = vector.broadcast %cst_22 : f32 to vector<128x128xf32>
    %41 = arith.select %38, %39, %40 : vector<128x128xi1>, vector<128x128xf32>
    %42 = arith.mulf %28, %41 : vector<128x128xf32>
    %43 = vector.extract_strided_slice %42 {offsets = [0, 0], sizes = [128, 32], strides = [1, 1]} : vector<128x128xf32> to vector<128x32xf32>
    %44 = vector.extract_strided_slice %42 {offsets = [0, 32], sizes = [128, 32], strides = [1, 1]} : vector<128x128xf32> to vector<128x32xf32>
    %45 = arith.addf %43, %44 : vector<128x32xf32>
    %46 = vector.extract_strided_slice %42 {offsets = [0, 64], sizes = [128, 32], strides = [1, 1]} : vector<128x128xf32> to vector<128x32xf32>
    %47 = arith.addf %45, %46 : vector<128x32xf32>
    %48 = vector.extract_strided_slice %42 {offsets = [0, 96], sizes = [128, 32], strides = [1, 1]} : vector<128x128xf32> to vector<128x32xf32>
    %49 = arith.addf %47, %48 : vector<128x32xf32>
    %50 = tpu.iota {dimensions = array<i32: 0>} : vector<24x128xi32>
    %c0_23 = arith.constant 0 : index
    %c0_24 = arith.constant 0 : index
    %51 = vector.load %arg5[%c0_23, %c0_24] : memref<1x128xi32, #tpu.memory_space<vmem>>, vector<1x128xi32>
    %52 = vector.broadcast %51 : vector<1x128xi32> to vector<24x128xi32>
    %53 = arith.cmpi eq, %50, %52 : vector<24x128xi32>
    %cst_25 = arith.constant 1.000000e+00 : f32
    %cst_26 = arith.constant 0.000000e+00 : f32
    %54 = vector.broadcast %cst_25 : f32 to vector<24x128xf32>
    %55 = vector.broadcast %cst_26 : f32 to vector<24x128xf32>
    %56 = arith.select %53, %54, %55 : vector<24x128xi1>, vector<24x128xf32>
    %57 = arith.truncf %56 : vector<24x128xf32> to vector<24x128xbf16>
    %c0_27 = arith.constant 0 : index
    %c0_28 = arith.constant 0 : index
    %58 = vector.load %arg19[%c0_27, %c0_28] : memref<24x32xf32, #tpu.memory_space<vmem>>, vector<24x32xf32>
    %59 = arith.truncf %49 : vector<128x32xf32> to vector<128x32xbf16>
    %cst_29 = arith.constant dense<0.000000e+00> : vector<24x32xf32>
    %60 = tpu.matmul %57, %59, %cst_29 {dimension_numbers = #tpu.dot_dimension_numbers<[1], [0], [0], [1], [0, 0, 1, 1], [], []>} : vector<24x128xbf16>, vector<128x32xbf16>, vector<24x32xf32> -> vector<24x32xf32>
    %61 = arith.addf %58, %60 : vector<24x32xf32>
    %c0_30 = arith.constant 0 : index
    %c0_31 = arith.constant 0 : index
    %62 = vector.load %arg19[%c0_30, %c0_31] : memref<24x32xf32, #tpu.memory_space<vmem>>, vector<24x32xf32>
    tpu.vector_store %arg19[%c0_30, %c0_31], %61 {strides = array<i32>} : memref<24x32xf32, #tpu.memory_space<vmem>>, vector<24x32xf32>,
    %c0_i32_32 = arith.constant 0 : i32
    %63 = arith.cmpi eq, %arg1, %c0_i32_32 : i32
    %64 = arith.extui %63 : i1 to i32
    %c0_i32_33 = arith.constant 0 : i32
    %65 = arith.cmpi ne, %64, %c0_i32_33 : i32
    scf.if %65 {
      %c0_34 = arith.constant 0 : index
      %c0_35 = arith.constant 0 : index
      %66 = vector.load %arg18[%c0_34, %c0_35] : memref<24x32xbf16, #tpu.memory_space<vmem>>, vector<24x32xbf16>
      %c0_36 = arith.constant 0 : index
      %c0_37 = arith.constant 0 : index
      %c0_38 = arith.constant 0 : index
      %67 = vector.load %arg10[%c0_36, %c0_37, %c0_38] : memref<1x32x32xbf16, #tpu.memory_space<vmem>>, vector<1x32x32xbf16>
      %68 = vector.shape_cast %67 : vector<1x32x32xbf16> to vector<32x32xbf16>
      %cst_39 = arith.constant dense<0.000000e+00> : vector<24x32xf32>
      %69 = tpu.matmul %66, %68, %cst_39 {dimension_numbers = #tpu.dot_dimension_numbers<[1], [0], [0], [1], [0, 0, 1, 1], [], []>} : vector<24x32xbf16>, vector<32x32xbf16>, vector<24x32xf32> -> vector<24x32xf32>
      %c0_40 = arith.constant 0 : index
      %c0_41 = arith.constant 0 : index
      %c0_42 = arith.constant 0 : index
      %70 = vector.load %arg11[%c0_40, %c0_41, %c0_42] : memref<1x1x32xf32, #tpu.memory_space<vmem>>, vector<1x1x32xf32>
      %71 = vector.shape_cast %70 : vector<1x1x32xf32> to vector<1x32xf32>
      %72 = vector.broadcast %71 : vector<1x32xf32> to vector<24x32xf32>
      %73 = arith.addf %69, %72 : vector<24x32xf32>
      %c0_43 = arith.constant 0 : index
      %c0_44 = arith.constant 0 : index
      %74 = vector.load %arg19[%c0_43, %c0_44] : memref<24x32xf32, #tpu.memory_space<vmem>>, vector<24x32xf32>
      %75 = arith.addf %74, %73 : vector<24x32xf32>
      %c1_i32 = arith.constant 1 : i32
      %76 = arith.cmpi eq, %arg0, %c1_i32 : i32
      %cst_45 = arith.constant 0.000000e+00 : f32
      %77 = vector.broadcast %cst_45 : f32 to vector<24x32xf32>
      %78 = arith.maximumf %75, %77 : vector<24x32xf32>
      %79 = arith.select %76, %75, %78 : vector<24x32xf32>
      %c0_46 = arith.constant 0 : index
      %c0_47 = arith.constant 0 : index
      %80 = vector.load %arg17[%c0_46, %c0_47] : memref<24x32xf32, #tpu.memory_space<vmem>>, vector<24x32xf32>
      tpu.vector_store %arg17[%c0_46, %c0_47], %79 {strides = array<i32>} : memref<24x32xf32, #tpu.memory_space<vmem>>, vector<24x32xf32>,
      %81 = arith.extui %76 : i1 to i32
      %c0_i32_48 = arith.constant 0 : i32
      %82 = arith.cmpi ne, %81, %c0_i32_48 : i32
      scf.if %82 {
        %83 = tpu.iota {dimensions = array<i32: 0>} : vector<8x24xi32>
        %c0_49 = arith.constant 0 : index
        %c0_50 = arith.constant 0 : index
        %84 = vector.load %arg7[%c0_49, %c0_50] : memref<1x24xi32, #tpu.memory_space<vmem>>, vector<1x24xi32>
        %85 = vector.broadcast %84 : vector<1x24xi32> to vector<8x24xi32>
        %86 = arith.cmpi eq, %83, %85 : vector<8x24xi32>
        %cst_51 = arith.constant 1.000000e+00 : f32
        %cst_52 = arith.constant 0.000000e+00 : f32
        %87 = vector.broadcast %cst_51 : f32 to vector<8x24xf32>
        %88 = vector.broadcast %cst_52 : f32 to vector<8x24xf32>
        %89 = arith.select %86, %87, %88 : vector<8x24xi1>, vector<8x24xf32>
        %90 = arith.truncf %89 : vector<8x24xf32> to vector<8x24xbf16>
        %91 = arith.truncf %75 : vector<24x32xf32> to vector<24x32xbf16>
        %cst_53 = arith.constant dense<0.000000e+00> : vector<8x32xf32>
        %92 = tpu.matmul %90, %91, %cst_53 {dimension_numbers = #tpu.dot_dimension_numbers<[1], [0], [0], [1], [0, 0, 1, 1], [], []>} : vector<8x24xbf16>, vector<24x32xbf16>, vector<8x32xf32> -> vector<8x32xf32>
        %93 = arith.truncf %92 : vector<8x32xf32> to vector<8x32xbf16>
        %c0_54 = arith.constant 0 : index
        %c0_55 = arith.constant 0 : index
        %94 = vector.load %arg12[%c0_54, %c0_55] : memref<32x16xbf16, #tpu.memory_space<vmem>>, vector<32x16xbf16>
        %cst_56 = arith.constant dense<0.000000e+00> : vector<8x16xf32>
        %95 = tpu.matmul %93, %94, %cst_56 {dimension_numbers = #tpu.dot_dimension_numbers<[1], [0], [0], [1], [0, 0, 1, 1], [], []>} : vector<8x32xbf16>, vector<32x16xbf16>, vector<8x16xf32> -> vector<8x16xf32>
        %c0_57 = arith.constant 0 : index
        %c0_58 = arith.constant 0 : index
        %96 = vector.load %arg13[%c0_57, %c0_58] : memref<1x16xf32, #tpu.memory_space<vmem>>, vector<1x16xf32>
        %97 = vector.broadcast %96 : vector<1x16xf32> to vector<8x16xf32>
        %98 = arith.addf %95, %97 : vector<8x16xf32>
        %cst_59 = arith.constant 0.000000e+00 : f32
        %99 = vector.broadcast %cst_59 : f32 to vector<8x16xf32>
        %100 = arith.maximumf %98, %99 : vector<8x16xf32>
        %c0_60 = arith.constant 0 : index
        %c0_61 = arith.constant 0 : index
        %101 = vector.load %arg14[%c0_60, %c0_61] : memref<1x16xf32, #tpu.memory_space<vmem>>, vector<1x16xf32>
        %102 = vector.broadcast %101 : vector<1x16xf32> to vector<8x16xf32>
        %103 = arith.mulf %100, %102 : vector<8x16xf32>
        %cst_62 = arith.constant dense<0.000000e+00> : vector<8xf32>
        %104 = vector.multi_reduction <add>, %103, %cst_62 [1] : vector<8x16xf32> to vector<8xf32>
        %105 = vector.shape_cast %104 : vector<8xf32> to vector<8x1xf32>
        %c0_63 = arith.constant 0 : index
        %c0_64 = arith.constant 0 : index
        %106 = vector.load %arg15[%c0_63, %c0_64] : memref<1x1xf32, #tpu.memory_space<vmem>>, vector<1x1xf32>
        %107 = vector.broadcast %106 : vector<1x1xf32> to vector<8x1xf32>
        %108 = arith.addf %105, %107 : vector<8x1xf32>
        %c0_65 = arith.constant 0 : index
        %c0_66 = arith.constant 0 : index
        %109 = vector.load %arg16[%c0_65, %c0_66] : memref<8x1xf32, #tpu.memory_space<vmem>>, vector<8x1xf32>
        tpu.vector_store %arg16[%c0_65, %c0_66], %108 {strides = array<i32>} : memref<8x1xf32, #tpu.memory_space<vmem>>, vector<8x1xf32>,
      } else {
      }
    } else {
    }
    return
  }
  func.func @transform_0(%arg0: i32, %arg1: i32) -> (i32, i32) {
    %c0_i32 = arith.constant 0 : i32
    %c0_i32_0 = arith.constant 0 : i32
    %c0_i32_1 = arith.constant 0 : i32
    return %c0_i32, %c0_i32_0 : i32, i32
  }
  func.func @transform_1(%arg0: i32, %arg1: i32) -> (i32, i32) {
    %c0_i32 = arith.constant 0 : i32
    %c0_i32_0 = arith.constant 0 : i32
    return %arg1, %c0_i32 : i32, i32
  }
  func.func @transform_2(%arg0: i32, %arg1: i32) -> (i32, i32) {
    %c0_i32 = arith.constant 0 : i32
    %c0_i32_0 = arith.constant 0 : i32
    return %arg1, %c0_i32 : i32, i32
  }
  func.func @transform_3(%arg0: i32, %arg1: i32) -> (i32, i32) {
    %c0_i32 = arith.constant 0 : i32
    %c0_i32_0 = arith.constant 0 : i32
    return %c0_i32, %arg1 : i32, i32
  }
  func.func @transform_4(%arg0: i32, %arg1: i32) -> (i32, i32) {
    %c0_i32 = arith.constant 0 : i32
    %c0_i32_0 = arith.constant 0 : i32
    return %arg1, %c0_i32 : i32, i32
  }
  func.func @transform_5(%arg0: i32, %arg1: i32) -> (i32, i32) {
    %c0_i32 = arith.constant 0 : i32
    %c0_i32_0 = arith.constant 0 : i32
    %c0_i32_1 = arith.constant 0 : i32
    return %c0_i32, %c0_i32_0 : i32, i32
  }
  func.func @transform_6(%arg0: i32, %arg1: i32) -> (i32, i32, i32) {
    %c0_i32 = arith.constant 0 : i32
    %c0_i32_0 = arith.constant 0 : i32
    %c0_i32_1 = arith.constant 0 : i32
    return %arg0, %c0_i32, %c0_i32_0 : i32, i32, i32
  }
  func.func @transform_7(%arg0: i32, %arg1: i32) -> (i32, i32, i32) {
    %c0_i32 = arith.constant 0 : i32
    %c0_i32_0 = arith.constant 0 : i32
    %c0_i32_1 = arith.constant 0 : i32
    return %arg0, %c0_i32, %c0_i32_0 : i32, i32, i32
  }
  func.func @transform_8(%arg0: i32, %arg1: i32) -> (i32, i32, i32) {
    %c0_i32 = arith.constant 0 : i32
    %c0_i32_0 = arith.constant 0 : i32
    %c0_i32_1 = arith.constant 0 : i32
    return %arg0, %c0_i32, %c0_i32_0 : i32, i32, i32
  }
  func.func @transform_9(%arg0: i32, %arg1: i32) -> (i32, i32, i32) {
    %c0_i32 = arith.constant 0 : i32
    %c0_i32_0 = arith.constant 0 : i32
    %c0_i32_1 = arith.constant 0 : i32
    return %arg0, %c0_i32, %c0_i32_0 : i32, i32, i32
  }
  func.func @transform_10(%arg0: i32, %arg1: i32) -> (i32, i32) {
    %c0_i32 = arith.constant 0 : i32
    %c0_i32_0 = arith.constant 0 : i32
    %c0_i32_1 = arith.constant 0 : i32
    return %c0_i32, %c0_i32_0 : i32, i32
  }
  func.func @transform_11(%arg0: i32, %arg1: i32) -> (i32, i32) {
    %c0_i32 = arith.constant 0 : i32
    %c0_i32_0 = arith.constant 0 : i32
    %c0_i32_1 = arith.constant 0 : i32
    return %c0_i32, %c0_i32_0 : i32, i32
  }
  func.func @transform_12(%arg0: i32, %arg1: i32) -> (i32, i32) {
    %c0_i32 = arith.constant 0 : i32
    %c0_i32_0 = arith.constant 0 : i32
    %c0_i32_1 = arith.constant 0 : i32
    return %c0_i32, %c0_i32_0 : i32, i32
  }
  func.func @transform_13(%arg0: i32, %arg1: i32) -> (i32, i32) {
    %c0_i32 = arith.constant 0 : i32
    %c0_i32_0 = arith.constant 0 : i32
    %c0_i32_1 = arith.constant 0 : i32
    return %c0_i32, %c0_i32_0 : i32, i32
  }
  func.func @transform_14(%arg0: i32, %arg1: i32) -> (i32, i32) {
    %c0_i32 = arith.constant 0 : i32
    %c0_i32_0 = arith.constant 0 : i32
    %c0_i32_1 = arith.constant 0 : i32
    return %c0_i32, %c0_i32_0 : i32, i32
  }
}

</mosaic_0001>

<llo_original>
// kernel: tpu_custom_call.1
$region0: #{tpu_custom_call.1}
  #allocation0 [shape = 'u32[]', space=smem, size = 0x4, offset = 0x4, fixed_abs, tag = 'smem constant byte address 0x4 - core index']
  #allocation1 [shape = 'u32[144,128]{1,0:T(1,128)}', space=vmem, size = 0x12000, scoped, tag = 'internal scratch']
  #allocation2 [shape = 'f32[24,32]{1,0:T(8,128)}', space=vmem, size = 0x3000, scoped, tag = 'scratch operand']
  #allocation3 [shape = 'bf16[24,32]{1,0:T(8,128)(2,1)}', space=vmem, size = 0x1800, scoped, tag = 'scratch operand']
  #allocation4 [shape = 'f32[24,32]{1,0:T(8,128)}', space=vmem, size = 0x3000, scoped, tag = 'scratch operand']
  #allocation5 [shape = 'f32[1,1]{1,0:T(1,128)S(1)}', space=vmem, size = 0x200, scoped, tag = 'scoped memory for tpu_custom_call.1']
  %s0 = inlined_call_operand.vmem [shape: f32[24,32], index: 0, kind: input, shape index: {}]
  %s1 = inlined_call_operand.vmem [shape: f32[128,4], index: 1, kind: input, shape index: {}]
  %s2 = inlined_call_operand.vmem [shape: s32[128,1], index: 2, kind: input, shape index: {}]
  %s3 = inlined_call_operand.vmem [shape: s32[1,128], index: 3, kind: input, shape index: {}]
  %s4 = inlined_call_operand.vmem [shape: s32[128,1], index: 4, kind: input, shape index: {}]
  %s5 = inlined_call_operand.vmem [shape: s32[1,24], index: 5, kind: input, shape index: {}]
  %s6 = inlined_call_operand.vmem [shape: bf16[2,36,128], index: 6, kind: input, shape index: {}]
  %s7 = inlined_call_operand.vmem [shape: f32[2,1,128], index: 7, kind: input, shape index: {}]
  %s8 = inlined_call_operand.vmem [shape: bf16[2,32,32], index: 8, kind: input, shape index: {}]
  %s9 = inlined_call_operand.vmem [shape: f32[2,1,32], index: 9, kind: input, shape index: {}]
  %s10 = inlined_call_operand.vmem [shape: bf16[32,16], index: 10, kind: input, shape index: {}]
  %s11 = inlined_call_operand.vmem [shape: f32[1,16], index: 11, kind: input, shape index: {}]
  %s12 = inlined_call_operand.vmem [shape: f32[1,16], index: 12, kind: input, shape index: {}]
  %s13 = inlined_call_operand.<no memory space> [shape: f32[1,1], index: 13, kind: input, shape index: {}]
  %s14 = inlined_call_operand.vmem [shape: f32[8,1], index: 14, kind: output, shape index: {}]
  %s15 = sld [smem:[#allocation0]]
  $region105: #{tpu_custom_call.1} parent=0
    _
  %s17 = ssub.s32 1, %s15
  %s18 = scalar_select 0, %s17, %s15
  %v19 = vstv %s13
  %20 = vst [vmem:[#allocation5] sm:$0x1] %v19
  loop: start=0, step=1, limit=4
  $region2: #{tpu_custom_call.1} parent=0 // loop_pre_header
    _
  $region3: #{tpu_custom_call.1} parent=0 // loop_header
    %s22 = sphi 0, %s26
    %p23 = scmp.ge.s32.totalorder %s22, 4
    %s29 = sphi 0, %s41
    %s30 = sphi 0, %s37
    %s31 = sphi 0, %s29
    %s32 = sphi 0, %s30
    %s33 = sphi 0, %s31
    %s34 = sphi 0, %s32
    %s42 = sphi 0, %s42
    %s44 = sphi 0, %s42
    %s45 = sphi 0, %s44
    %s59 = sphi 0, %s45
    %s65 = sphi 0, %s67
    %s68 = sphi 0, %s65
    %s69 = sphi 0, %s68
    %s85 = sphi 0, %s69
    %s91 = sphi 0, %s93
    %s94 = sphi 0, %s91
    %s95 = sphi 0, %s94
    %s111 = sphi 0, %s95
    %s117 = sphi 0, %s119
    %s120 = sphi 0, %s117
    %s121 = sphi 0, %s120
    %s137 = sphi 0, %s121
    %s143 = sphi 0, %s145
    %s146 = sphi 0, %s143
    %s147 = sphi 0, %s146
    %s163 = sphi 0, %s147
    %s167 = sphi 0, %s167
    %s169 = sphi 0, %s167
    %s170 = sphi 0, %s169
    %s184 = sphi 0, %s170
    %s190 = sphi 0, %s192
    %s193 = sphi 0, %s190
    %s194 = sphi 0, %s193
    %s210 = sphi 0, %s194
    %s216 = sphi 0, %s218
    %s219 = sphi 0, %s216
    %s220 = sphi 0, %s219
    %s236 = sphi 0, %s220
    %s242 = sphi 0, %s244
    %s245 = sphi 0, %s242
    %s246 = sphi 0, %s245
    %s262 = sphi 0, %s246
    %s268 = sphi 0, %s270
    %s271 = sphi 0, %s268
    %s272 = sphi 0, %s271
    %s288 = sphi 0, %s272
    %s292 = sphi 0, %s292
    %s294 = sphi 0, %s292
    %s295 = sphi 0, %s294
    %s309 = sphi 0, %s295
    %s313 = sphi 0, %s313
    %s315 = sphi 0, %s313
    %s316 = sphi 0, %s315
    %s330 = sphi 0, %s316
    %s334 = sphi 0, %s334
    %s336 = sphi 0, %s334
    %s337 = sphi 0, %s336
    %s351 = sphi 0, %s337
    %s355 = sphi 0, %s355
    %s357 = sphi 0, %s355
    %s358 = sphi 0, %s357
    %s372 = sphi 0, %s358
    %s376 = sphi 0, %s376
    %s378 = sphi 0, %s376
    %s379 = sphi 0, %s378
    %s393 = sphi 0, %s379
  $region4: #{tpu_custom_call.1} parent=0 // loop_header_branch
    %25 = sbr.rel (%p23) target = $region8
  $region5: #{tpu_custom_call.1} parent=0 // loop_body
    %s27 = ssub.s32 %s22, 1
    %s28 = ssub.s32 %s22, 2
    %s35 = sadd.s32 1, %s30
    %p36 = scmp.ge.s32.totalorder %s35, 1
    %s37 = scalar_select %p36, 0, %s35
    %s38 = sadd.s32 1, %s29
    %s39 = scalar_select %p36, %s38, %s29
    %p40 = scmp.ge.s32.totalorder %s39, 2
    %s41 = scalar_select %p40, 0, %s39
    %s43 = sadd.s32 %s42, 1
    %p46 = scmp.eq.s32.totalorder %s22, 1
    %p47 = scmp.ne.s32.totalorder %s42, %s44
    %p48 = scmp.eq.s32.totalorder %s22, 0
    %p49 = por %p47, %p48
    %p50 = scmp.ne.s32.totalorder %s42, %s44
    %p51 = scmp.eq.s32.totalorder %s27, 1
    %p52 = por %p50, %p51
    %p53 = scmp.ne.s32.totalorder %s44, %s45
    %p54 = scmp.eq.s32.totalorder %s27, 0
    %p55 = por %p53, %p54
    %p56 = scmp.ne.s32.totalorder %s44, %s45
    %p57 = scmp.eq.s32.totalorder %s28, 1
    %p58 = por %p56, %p57
    %p60 = scmp.ne.s32.totalorder %s45, %s59
    %p61 = scmp.eq.s32.totalorder %s28, 0
    %p62 = por %p60, %p61
    %s63 = ssub.s32 %s30, %s37
    %p64 = scmp.eq.s32.totalorder %s63, 0
    %s66 = sadd.s32 %s65, 1
    %s67 = scalar_select %p64, %s65, %s66
    %p70 = pneg %p64
    %p71 = scmp.eq.s32.totalorder %s22, 1
    %p72 = por %p70, %p71
    %p73 = scmp.ne.s32.totalorder %s65, %s68
    %p74 = scmp.eq.s32.totalorder %s22, 0
    %p75 = por %p73, %p74
    %p76 = scmp.ne.s32.totalorder %s65, %s68
    %p77 = scmp.eq.s32.totalorder %s27, 1
    %p78 = por %p76, %p77
    %p79 = scmp.ne.s32.totalorder %s68, %s69
    %p80 = scmp.eq.s32.totalorder %s27, 0
    %p81 = por %p79, %p80
    %p82 = scmp.ne.s32.totalorder %s68, %s69
    %p83 = scmp.eq.s32.totalorder %s28, 1
    %p84 = por %p82, %p83
    %p86 = scmp.ne.s32.totalorder %s69, %s85
    %p87 = scmp.eq.s32.totalorder %s28, 0
    %p88 = por %p86, %p87
    %s89 = ssub.s32 %s30, %s37
    %p90 = scmp.eq.s32.totalorder %s89, 0
    %s92 = sadd.s32 %s91, 1
    %s93 = scalar_select %p90, %s91, %s92
    %p96 = pneg %p90
    %p97 = scmp.eq.s32.totalorder %s22, 1
    %p98 = por %p96, %p97
    %p99 = scmp.ne.s32.totalorder %s91, %s94
    %p100 = scmp.eq.s32.totalorder %s22, 0
    %p101 = por %p99, %p100
    %p102 = scmp.ne.s32.totalorder %s91, %s94
    %p103 = scmp.eq.s32.totalorder %s27, 1
    %p104 = por %p102, %p103
    %p105 = scmp.ne.s32.totalorder %s94, %s95
    %p106 = scmp.eq.s32.totalorder %s27, 0
    %p107 = por %p105, %p106
    %p108 = scmp.ne.s32.totalorder %s94, %s95
    %p109 = scmp.eq.s32.totalorder %s28, 1
    %p110 = por %p108, %p109
    %p112 = scmp.ne.s32.totalorder %s95, %s111
    %p113 = scmp.eq.s32.totalorder %s28, 0
    %p114 = por %p112, %p113
    %s115 = ssub.s32 %s30, %s37
    %p116 = scmp.eq.s32.totalorder %s115, 0
    %s118 = sadd.s32 %s117, 1
    %s119 = scalar_select %p116, %s117, %s118
    %p122 = pneg %p116
    %p123 = scmp.eq.s32.totalorder %s22, 1
    %p124 = por %p122, %p123
    %p125 = scmp.ne.s32.totalorder %s117, %s120
    %p126 = scmp.eq.s32.totalorder %s22, 0
    %p127 = por %p125, %p126
    %p128 = scmp.ne.s32.totalorder %s117, %s120
    %p129 = scmp.eq.s32.totalorder %s27, 1
    %p130 = por %p128, %p129
    %p131 = scmp.ne.s32.totalorder %s120, %s121
    %p132 = scmp.eq.s32.totalorder %s27, 0
    %p133 = por %p131, %p132
    %p134 = scmp.ne.s32.totalorder %s120, %s121
    %p135 = scmp.eq.s32.totalorder %s28, 1
    %p136 = por %p134, %p135
    %p138 = scmp.ne.s32.totalorder %s121, %s137
    %p139 = scmp.eq.s32.totalorder %s28, 0
    %p140 = por %p138, %p139
    %s141 = ssub.s32 %s30, %s37
    %p142 = scmp.eq.s32.totalorder %s141, 0
    %s144 = sadd.s32 %s143, 1
    %s145 = scalar_select %p142, %s143, %s144
    %p148 = pneg %p142
    %p149 = scmp.eq.s32.totalorder %s22, 1
    %p150 = por %p148, %p149
    %p151 = scmp.ne.s32.totalorder %s143, %s146
    %p152 = scmp.eq.s32.totalorder %s22, 0
    %p153 = por %p151, %p152
    %p154 = scmp.ne.s32.totalorder %s143, %s146
    %p155 = scmp.eq.s32.totalorder %s27, 1
    %p156 = por %p154, %p155
    %p157 = scmp.ne.s32.totalorder %s146, %s147
    %p158 = scmp.eq.s32.totalorder %s27, 0
    %p159 = por %p157, %p158
    %p160 = scmp.ne.s32.totalorder %s146, %s147
    %p161 = scmp.eq.s32.totalorder %s28, 1
    %p162 = por %p160, %p161
    %p164 = scmp.ne.s32.totalorder %s147, %s163
    %p165 = scmp.eq.s32.totalorder %s28, 0
    %p166 = por %p164, %p165
    %s168 = sadd.s32 %s167, 1
    %p171 = scmp.eq.s32.totalorder %s22, 1
    %p172 = scmp.ne.s32.totalorder %s167, %s169
    %p173 = scmp.eq.s32.totalorder %s22, 0
    %p174 = por %p172, %p173
    %p175 = scmp.ne.s32.totalorder %s167, %s169
    %p176 = scmp.eq.s32.totalorder %s27, 1
    %p177 = por %p175, %p176
    %p178 = scmp.ne.s32.totalorder %s169, %s170
    %p179 = scmp.eq.s32.totalorder %s27, 0
    %p180 = por %p178, %p179
    %p181 = scmp.ne.s32.totalorder %s169, %s170
    %p182 = scmp.eq.s32.totalorder %s28, 1
    %p183 = por %p181, %p182
    %p185 = scmp.ne.s32.totalorder %s170, %s184
    %p186 = scmp.eq.s32.totalorder %s28, 0
    %p187 = por %p185, %p186
    %s188 = ssub.s32 %s29, %s41
    %p189 = scmp.eq.s32.totalorder %s188, 0
    %s191 = sadd.s32 %s190, 1
    %s192 = scalar_select %p189, %s190, %s191
    %p195 = pneg %p189
    %p196 = scmp.eq.s32.totalorder %s22, 1
    %p197 = por %p195, %p196
    %p198 = scmp.ne.s32.totalorder %s190, %s193
    %p199 = scmp.eq.s32.totalorder %s22, 0
    %p200 = por %p198, %p199
    %p201 = scmp.ne.s32.totalorder %s190, %s193
    %p202 = scmp.eq.s32.totalorder %s27, 1
    %p203 = por %p201, %p202
    %p204 = scmp.ne.s32.totalorder %s193, %s194
    %p205 = scmp.eq.s32.totalorder %s27, 0
    %p206 = por %p204, %p205
    %p207 = scmp.ne.s32.totalorder %s193, %s194
    %p208 = scmp.eq.s32.totalorder %s28, 1
    %p209 = por %p207, %p208
    %p211 = scmp.ne.s32.totalorder %s194, %s210
    %p212 = scmp.eq.s32.totalorder %s28, 0
    %p213 = por %p211, %p212
    %s214 = ssub.s32 %s29, %s41
    %p215 = scmp.eq.s32.totalorder %s214, 0
    %s217 = sadd.s32 %s216, 1
    %s218 = scalar_select %p215, %s216, %s217
    %p221 = pneg %p215
    %p222 = scmp.eq.s32.totalorder %s22, 1
    %p223 = por %p221, %p222
    %p224 = scmp.ne.s32.totalorder %s216, %s219
    %p225 = scmp.eq.s32.totalorder %s22, 0
    %p226 = por %p224, %p225
    %p227 = scmp.ne.s32.totalorder %s216, %s219
    %p228 = scmp.eq.s32.totalorder %s27, 1
    %p229 = por %p227, %p228
    %p230 = scmp.ne.s32.totalorder %s219, %s220
    %p231 = scmp.eq.s32.totalorder %s27, 0
    %p232 = por %p230, %p231
    %p233 = scmp.ne.s32.totalorder %s219, %s220
    %p234 = scmp.eq.s32.totalorder %s28, 1
    %p235 = por %p233, %p234
    %p237 = scmp.ne.s32.totalorder %s220, %s236
    %p238 = scmp.eq.s32.totalorder %s28, 0
    %p239 = por %p237, %p238
    %s240 = ssub.s32 %s29, %s41
    %p241 = scmp.eq.s32.totalorder %s240, 0
    %s243 = sadd.s32 %s242, 1
    %s244 = scalar_select %p241, %s242, %s243
    %p247 = pneg %p241
    %p248 = scmp.eq.s32.totalorder %s22, 1
    %p249 = por %p247, %p248
    %p250 = scmp.ne.s32.totalorder %s242, %s245
    %p251 = scmp.eq.s32.totalorder %s22, 0
    %p252 = por %p250, %p251
    %p253 = scmp.ne.s32.totalorder %s242, %s245
    %p254 = scmp.eq.s32.totalorder %s27, 1
    %p255 = por %p253, %p254
    %p256 = scmp.ne.s32.totalorder %s245, %s246
    %p257 = scmp.eq.s32.totalorder %s27, 0
    %p258 = por %p256, %p257
    %p259 = scmp.ne.s32.totalorder %s245, %s246
    %p260 = scmp.eq.s32.totalorder %s28, 1
    %p261 = por %p259, %p260
    %p263 = scmp.ne.s32.totalorder %s246, %s262
    %p264 = scmp.eq.s32.totalorder %s28, 0
    %p265 = por %p263, %p264
    %s266 = ssub.s32 %s29, %s41
    %p267 = scmp.eq.s32.totalorder %s266, 0
    %s269 = sadd.s32 %s268, 1
    %s270 = scalar_select %p267, %s268, %s269
    %p273 = pneg %p267
    %p274 = scmp.eq.s32.totalorder %s22, 1
    %p275 = por %p273, %p274
    %p276 = scmp.ne.s32.totalorder %s268, %s271
    %p277 = scmp.eq.s32.totalorder %s22, 0
    %p278 = por %p276, %p277
    %p279 = scmp.ne.s32.totalorder %s268, %s271
    %p280 = scmp.eq.s32.totalorder %s27, 1
    %p281 = por %p279, %p280
    %p282 = scmp.ne.s32.totalorder %s271, %s272
    %p283 = scmp.eq.s32.totalorder %s27, 0
    %p284 = por %p282, %p283
    %p285 = scmp.ne.s32.totalorder %s271, %s272
    %p286 = scmp.eq.s32.totalorder %s28, 1
    %p287 = por %p285, %p286
    %p289 = scmp.ne.s32.totalorder %s272, %s288
    %p290 = scmp.eq.s32.totalorder %s28, 0
    %p291 = por %p289, %p290
    %s293 = sadd.s32 %s292, 1
    %p296 = scmp.eq.s32.totalorder %s22, 1
    %p297 = scmp.ne.s32.totalorder %s292, %s294
    %p298 = scmp.eq.s32.totalorder %s22, 0
    %p299 = por %p297, %p298
    %p300 = scmp.ne.s32.totalorder %s292, %s294
    %p301 = scmp.eq.s32.totalorder %s27, 1
    %p302 = por %p300, %p301
    %p303 = scmp.ne.s32.totalorder %s294, %s295
    %p304 = scmp.eq.s32.totalorder %s27, 0
    %p305 = por %p303, %p304
    %p306 = scmp.ne.s32.totalorder %s294, %s295
    %p307 = scmp.eq.s32.totalorder %s28, 1
    %p308 = por %p306, %p307
    %p310 = scmp.ne.s32.totalorder %s295, %s309
    %p311 = scmp.eq.s32.totalorder %s28, 0
    %p312 = por %p310, %p311
    %s314 = sadd.s32 %s313, 1
    %p317 = scmp.eq.s32.totalorder %s22, 1
    %p318 = scmp.ne.s32.totalorder %s313, %s315
    %p319 = scmp.eq.s32.totalorder %s22, 0
    %p320 = por %p318, %p319
    %p321 = scmp.ne.s32.totalorder %s313, %s315
    %p322 = scmp.eq.s32.totalorder %s27, 1
    %p323 = por %p321, %p322
    %p324 = scmp.ne.s32.totalorder %s315, %s316
    %p325 = scmp.eq.s32.totalorder %s27, 0
    %p326 = por %p324, %p325
    %p327 = scmp.ne.s32.totalorder %s315, %s316
    %p328 = scmp.eq.s32.totalorder %s28, 1
    %p329 = por %p327, %p328
    %p331 = scmp.ne.s32.totalorder %s316, %s330
    %p332 = scmp.eq.s32.totalorder %s28, 0
    %p333 = por %p331, %p332
    %s335 = sadd.s32 %s334, 1
    %p338 = scmp.eq.s32.totalorder %s22, 1
    %p339 = scmp.ne.s32.totalorder %s334, %s336
    %p340 = scmp.eq.s32.totalorder %s22, 0
    %p341 = por %p339, %p340
    %p342 = scmp.ne.s32.totalorder %s334, %s336
    %p343 = scmp.eq.s32.totalorder %s27, 1
    %p344 = por %p342, %p343
    %p345 = scmp.ne.s32.totalorder %s336, %s337
    %p346 = scmp.eq.s32.totalorder %s27, 0
    %p347 = por %p345, %p346
    %p348 = scmp.ne.s32.totalorder %s336, %s337
    %p349 = scmp.eq.s32.totalorder %s28, 1
    %p350 = por %p348, %p349
    %p352 = scmp.ne.s32.totalorder %s337, %s351
    %p353 = scmp.eq.s32.totalorder %s28, 0
    %p354 = por %p352, %p353
    %s356 = sadd.s32 %s355, 1
    %p359 = scmp.eq.s32.totalorder %s22, 1
    %p360 = scmp.ne.s32.totalorder %s355, %s357
    %p361 = scmp.eq.s32.totalorder %s22, 0
    %p362 = por %p360, %p361
    %p363 = scmp.ne.s32.totalorder %s355, %s357
    %p364 = scmp.eq.s32.totalorder %s27, 1
    %p365 = por %p363, %p364
    %p366 = scmp.ne.s32.totalorder %s357, %s358
    %p367 = scmp.eq.s32.totalorder %s27, 0
    %p368 = por %p366, %p367
    %p369 = scmp.ne.s32.totalorder %s357, %s358
    %p370 = scmp.eq.s32.totalorder %s28, 1
    %p371 = por %p369, %p370
    %p373 = scmp.ne.s32.totalorder %s358, %s372
    %p374 = scmp.eq.s32.totalorder %s28, 0
    %p375 = por %p373, %p374
    %s377 = sadd.s32 %s376, 1
    %p380 = scmp.eq.s32.totalorder %s22, 1
    %p381 = scmp.ne.s32.totalorder %s376, %s378
    %p382 = scmp.eq.s32.totalorder %s22, 0
    %p383 = por %p381, %p382
    %p384 = scmp.ne.s32.totalorder %s376, %s378
    %p385 = scmp.eq.s32.totalorder %s27, 1
    %p386 = por %p384, %p385
    %p387 = scmp.ne.s32.totalorder %s378, %s379
    %p388 = scmp.eq.s32.totalorder %s27, 0
    %p389 = por %p387, %p388
    %p390 = scmp.ne.s32.totalorder %s378, %s379
    %p391 = scmp.eq.s32.totalorder %s28, 1
    %p392 = por %p390, %p391
    %p394 = scmp.ne.s32.totalorder %s379, %s393
    %p395 = scmp.eq.s32.totalorder %s28, 0
    %p396 = por %p394, %p395
    %p397 = scmp.le.s32.totalorder 1, %s22
    %p398 = scmp.lt.s32.totalorder %s22, 3
    %p399 = pnand %p397, %p398
    %p400 = pneg %p399
    // Predicated region
    $region9: #{tpu_custom_call.1} parent=5 // pred_check
      _
    $region10: #{tpu_custom_call.1} parent=5 // pred_check_branch
      %402 = sbr.rel (%p399) target = $region12
    $region11: #{tpu_custom_call.1} parent=5 // pred_region
      %s403 = ssub.s32 %s22, 1
      // Predicated region
      $region13: #{tpu_custom_call.1} parent=11 // pred_check
        %p404 = pneg %p55
      $region14: #{tpu_custom_call.1} parent=11 // pred_check_branch
        %406 = sbr.rel (%p404) target = $region16
      $region15: #{tpu_custom_call.1} parent=11 // pred_region
        _
      $region16: #{tpu_custom_call.1} parent=11 // pred_fallthru
        _
      // Predicated region
      $region17: #{tpu_custom_call.1} parent=11 // pred_check
        %p407 = pneg %p81
      $region18: #{tpu_custom_call.1} parent=11 // pred_check_branch
        %409 = sbr.rel (%p407) target = $region20
      $region19: #{tpu_custom_call.1} parent=11 // pred_region
        %s410 = smul.u32 16, %s32
        %p411 = scmp.lt.s32.totalorder %s410, 15
        %s412 = scalar_select %p411, %s410, 15
        %s413 = smul.addr %s412, 8
        %s414 = scalar_lea.vmem %s1, %s413
        %s415 = smul.u32 16, %s32
      $region20: #{tpu_custom_call.1} parent=11 // pred_fallthru
        _
      // Predicated region
      $region21: #{tpu_custom_call.1} parent=11 // pred_check
        %p416 = pneg %p107
      $region22: #{tpu_custom_call.1} parent=11 // pred_check_branch
        %418 = sbr.rel (%p416) target = $region24
      $region23: #{tpu_custom_call.1} parent=11 // pred_region
        %s419 = smul.u32 16, %s32
        %p420 = scmp.lt.s32.totalorder %s419, 15
        %s421 = scalar_select %p420, %s419, 15
        %s422 = smul.addr %s421, 8
        %s423 = scalar_lea.vmem %s2, %s422
        %s424 = smul.u32 16, %s32
      $region24: #{tpu_custom_call.1} parent=11 // pred_fallthru
        _
      // Predicated region
      $region25: #{tpu_custom_call.1} parent=11 // pred_check
        %p425 = pneg %p133
      $region26: #{tpu_custom_call.1} parent=11 // pred_check_branch
        %427 = sbr.rel (%p425) target = $region28
      $region27: #{tpu_custom_call.1} parent=11 // pred_region
        %p428 = scmp.lt.s32.totalorder %s32, 0
        %s429 = scalar_select %p428, %s32, 0
        %s430 = scalar_lea.vmem %s3, %s429
      $region28: #{tpu_custom_call.1} parent=11 // pred_fallthru
        _
      // Predicated region
      $region29: #{tpu_custom_call.1} parent=11 // pred_check
        %p431 = pneg %p159
      $region30: #{tpu_custom_call.1} parent=11 // pred_check_branch
        %433 = sbr.rel (%p431) target = $region32
      $region31: #{tpu_custom_call.1} parent=11 // pred_region
        %s434 = smul.u32 16, %s32
        %p435 = scmp.lt.s32.totalorder %s434, 15
        %s436 = scalar_select %p435, %s434, 15
        %s437 = smul.addr %s436, 8
        %s438 = scalar_lea.vmem %s4, %s437
        %s439 = smul.u32 16, %s32
      $region32: #{tpu_custom_call.1} parent=11 // pred_fallthru
        _
      // Predicated region
      $region33: #{tpu_custom_call.1} parent=11 // pred_check
        %p440 = pneg %p180
      $region34: #{tpu_custom_call.1} parent=11 // pred_check_branch
        %442 = sbr.rel (%p440) target = $region36
      $region35: #{tpu_custom_call.1} parent=11 // pred_region
        _
      $region36: #{tpu_custom_call.1} parent=11 // pred_fallthru
        _
      // Predicated region
      $region37: #{tpu_custom_call.1} parent=11 // pred_check
        %p443 = pneg %p305
      $region38: #{tpu_custom_call.1} parent=11 // pred_check_branch
        %445 = sbr.rel (%p443) target = $region40
      $region39: #{tpu_custom_call.1} parent=11 // pred_region
        _
      $region40: #{tpu_custom_call.1} parent=11 // pred_fallthru
        _
      // Predicated region
      $region41: #{tpu_custom_call.1} parent=11 // pred_check
        %p446 = pneg %p326
      $region42: #{tpu_custom_call.1} parent=11 // pred_check_branch
        %448 = sbr.rel (%p446) target = $region44
      $region43: #{tpu_custom_call.1} parent=11 // pred_region
        _
      $region44: #{tpu_custom_call.1} parent=11 // pred_fallthru
        _
      // Predicated region
      $region45: #{tpu_custom_call.1} parent=11 // pred_check
        %p449 = pneg %p347
      $region46: #{tpu_custom_call.1} parent=11 // pred_check_branch
        %451 = sbr.rel (%p449) target = $region48
      $region47: #{tpu_custom_call.1} parent=11 // pred_region
        _
      $region48: #{tpu_custom_call.1} parent=11 // pred_fallthru
        _
      // Predicated region
      $region49: #{tpu_custom_call.1} parent=11 // pred_check
        %p452 = pneg %p368
      $region50: #{tpu_custom_call.1} parent=11 // pred_check_branch
        %454 = sbr.rel (%p452) target = $region52
      $region51: #{tpu_custom_call.1} parent=11 // pred_region
        _
      $region52: #{tpu_custom_call.1} parent=11 // pred_fallthru
        _
    $region12: #{tpu_custom_call.1} parent=5 // pred_fallthru
      _
    %p455 = scmp.lt.s32.totalorder %s22, 2
    // Predicated region
    $region53: #{tpu_custom_call.1} parent=5 // pred_check
      %p456 = pneg %p455
    $region54: #{tpu_custom_call.1} parent=5 // pred_check_branch
      %458 = sbr.rel (%p456) target = $region56
    $region55: #{tpu_custom_call.1} parent=5 // pred_region
      // Predicated region
      $region57: #{tpu_custom_call.1} parent=55 // pred_check
        %p459 = pneg %p200
      $region58: #{tpu_custom_call.1} parent=55 // pred_check_branch
        %461 = sbr.rel (%p459) target = $region60
      $region59: #{tpu_custom_call.1} parent=55 // pred_region
        %p462 = scmp.lt.s32.totalorder %s29, 1
        %s463 = scalar_select %p462, %s29, 1
        %s464 = smul.addr %s463, 5
        %s465 = smul.addr %s464, 4
        %s466 = scalar_lea.vmem %s6, %s465
      $region60: #{tpu_custom_call.1} parent=55 // pred_fallthru
        _
      // Predicated region
      $region61: #{tpu_custom_call.1} parent=55 // pred_check
        %p467 = pneg %p226
      $region62: #{tpu_custom_call.1} parent=55 // pred_check_branch
        %469 = sbr.rel (%p467) target = $region64
      $region63: #{tpu_custom_call.1} parent=55 // pred_region
        %p470 = scmp.lt.s32.totalorder %s29, 1
        %s471 = scalar_select %p470, %s29, 1
        %s472 = scalar_lea.vmem %s7, %s471
      $region64: #{tpu_custom_call.1} parent=55 // pred_fallthru
        _
      // Predicated region
      $region65: #{tpu_custom_call.1} parent=55 // pred_check
        %p473 = pneg %p252
      $region66: #{tpu_custom_call.1} parent=55 // pred_check_branch
        %475 = sbr.rel (%p473) target = $region68
      $region67: #{tpu_custom_call.1} parent=55 // pred_region
        %p476 = scmp.lt.s32.totalorder %s29, 1
        %s477 = scalar_select %p476, %s29, 1
        %s478 = smul.addr %s477, 4
        %s479 = smul.addr %s478, 4
        %s480 = scalar_lea.vmem %s8, %s479
      $region68: #{tpu_custom_call.1} parent=55 // pred_fallthru
        _
      // Predicated region
      $region69: #{tpu_custom_call.1} parent=55 // pred_check
        %p481 = pneg %p278
      $region70: #{tpu_custom_call.1} parent=55 // pred_check_branch
        %483 = sbr.rel (%p481) target = $region72
      $region71: #{tpu_custom_call.1} parent=55 // pred_region
        %p484 = scmp.lt.s32.totalorder %s29, 1
        %s485 = scalar_select %p484, %s29, 1
        %s486 = scalar_lea.vmem %s9, %s485
      $region72: #{tpu_custom_call.1} parent=55 // pred_fallthru
        _
    $region56: #{tpu_custom_call.1} parent=5 // pred_fallthru
      _
    %p487 = scmp.le.s32.totalorder 1, %s22
    %p488 = scmp.lt.s32.totalorder %s22, 3
    %p489 = pnand %p487, %p488
    %p490 = pneg %p489
    // Predicated region
    $region73: #{tpu_custom_call.1} parent=5 // pred_check
      _
    $region74: #{tpu_custom_call.1} parent=5 // pred_check_branch
      %492 = sbr.rel (%p489) target = $region76
    $region75: #{tpu_custom_call.1} parent=5 // pred_region
      %s493 = ssub.s32 %s22, 1
      %p494 = pneg %p55
      %p495 = pneg %p52
      %s496 = smul.u32 16, %s32
      %p497 = scmp.lt.s32.totalorder %s496, 15
      %s498 = scalar_select %p497, %s496, 15
      %s499 = smul.addr %s498, 8
      %s500 = scalar_lea.vmem %s1, %s499
      %p501 = pneg %p81
      %p502 = pneg %p78
      %s503 = smul.u32 16, %s32
      %p504 = scmp.lt.s32.totalorder %s503, 15
      %s505 = scalar_select %p504, %s503, 15
      %s506 = smul.addr %s505, 8
      %s507 = scalar_lea.vmem %s2, %s506
      %p508 = pneg %p107
      %p509 = pneg %p104
      %p510 = scmp.lt.s32.totalorder %s32, 0
      %s511 = scalar_select %p510, %s32, 0
      %s512 = scalar_lea.vmem %s3, %s511
      %p513 = pneg %p133
      %p514 = pneg %p130
      %s515 = smul.u32 16, %s32
      %p516 = scmp.lt.s32.totalorder %s515, 15
      %s517 = scalar_select %p516, %s515, 15
      %s518 = smul.addr %s517, 8
      %s519 = scalar_lea.vmem %s4, %s518
      %p520 = pneg %p159
      %p521 = pneg %p156
      %p522 = pneg %p180
      %p523 = pneg %p177
      %p524 = scmp.lt.s32.totalorder %s31, 1
      %s525 = scalar_select %p524, %s31, 1
      %s526 = smul.addr %s525, 5
      %s527 = smul.addr %s526, 4
      %s528 = scalar_lea.vmem %s6, %s527
      %p529 = pneg %p206
      %p530 = pneg %p203
      %p531 = scmp.lt.s32.totalorder %s31, 1
      %s532 = scalar_select %p531, %s31, 1
      %s533 = scalar_lea.vmem %s7, %s532
      %p534 = pneg %p232
      %p535 = pneg %p229
      %p536 = scmp.lt.s32.totalorder %s31, 1
      %s537 = scalar_select %p536, %s31, 1
      %s538 = smul.addr %s537, 4
      %s539 = smul.addr %s538, 4
      %s540 = scalar_lea.vmem %s8, %s539
      %p541 = pneg %p258
      %p542 = pneg %p255
      %p543 = scmp.lt.s32.totalorder %s31, 1
      %s544 = scalar_select %p543, %s31, 1
      %s545 = scalar_lea.vmem %s9, %s544
      %p546 = pneg %p284
      %p547 = pneg %p281
      %p548 = pneg %p305
      %p549 = pneg %p302
      %p550 = pneg %p326
      %p551 = pneg %p323
      %p552 = pneg %p347
      %p553 = pneg %p344
      %p554 = pneg %p368
      %p555 = pneg %p365
      %p556 = pneg %p389
      %p557 = pneg %p386
      %s558 = smul.u32 16, %s32
      %p559 = scmp.lt.s32.totalorder %s558, 15
      %s560 = scalar_select %p559, %s558, 15
      %s561 = smul.addr %s560, 8
      %s562 = scalar_lea.vmem %s1, %s561
      %s563 = smul.u32 16, %s32
      %s564 = smul.u32 16, %s32
      %p565 = scmp.lt.s32.totalorder %s564, 15
      %s566 = scalar_select %p565, %s564, 15
      %s567 = smul.addr %s566, 8
      %s568 = scalar_lea.vmem %s2, %s567
      %s569 = smul.u32 16, %s32
      %p570 = scmp.lt.s32.totalorder %s32, 0
      %s571 = scalar_select %p570, %s32, 0
      %s572 = scalar_lea.vmem %s3, %s571
      %s573 = smul.u32 16, %s32
      %p574 = scmp.lt.s32.totalorder %s573, 15
      %s575 = scalar_select %p574, %s573, 15
      %s576 = smul.addr %s575, 8
      %s577 = scalar_lea.vmem %s4, %s576
      %s578 = smul.u32 16, %s32
      %p579 = scmp.lt.s32.totalorder %s31, 1
      %s580 = scalar_select %p579, %s31, 1
      %s581 = smul.addr %s580, 5
      %s582 = smul.addr %s581, 4
      %s583 = scalar_lea.vmem %s6, %s582
      %p584 = scmp.lt.s32.totalorder %s31, 1
      %s585 = scalar_select %p584, %s31, 1
      %s586 = scalar_lea.vmem %s7, %s585
      %p587 = scmp.lt.s32.totalorder %s31, 1
      %s588 = scalar_select %p587, %s31, 1
      %s589 = smul.addr %s588, 4
      %s590 = smul.addr %s589, 4
      %s591 = scalar_lea.vmem %s8, %s590
      %p592 = scmp.lt.s32.totalorder %s31, 1
      %s593 = scalar_select %p592, %s31, 1
      %s594 = scalar_lea.vmem %s9, %s593
      %p596 = scmp.eq.s32.totalorder %s31, 0
      %p597 = scmp.eq.s32.totalorder %s32, 0
      %p598 = pnand %p596, %p597
      %p599 = pneg %p598
      // Predicated region
      $region77: #{tpu_custom_call.1} parent=75 // pred_check
        _
      $region78: #{tpu_custom_call.1} parent=75 // pred_check_branch
        %601 = sbr.rel (%p598) target = $region80
      $region79: #{tpu_custom_call.1} parent=75 // pred_region
        %v602 = vld [vmem:[%s0] sm:$0xff]
        %v603 = vld [vmem:[%s0 + $0x8] sm:$0xff]
        %v604 = vld [vmem:[%s0 + $0x10] sm:$0xff]
        %vm605 = vcmask 261120
        %606 = vst.msk [vmem:[#allocation2] sm:$0xff] %vm605, %v602
        %607 = vst.msk [vmem:[#allocation2 + $0x8] sm:$0xff] %vm605, %v603
        %608 = vst.msk [vmem:[#allocation2 + $0x10] sm:$0xff] %vm605, %v604
      $region80: #{tpu_custom_call.1} parent=75 // pred_fallthru
        _
      // Predicated region
      $region81: #{tpu_custom_call.1} parent=75 // pred_check
        %p609 = pneg %p597
      $region82: #{tpu_custom_call.1} parent=75 // pred_check_branch
        %611 = sbr.rel (%p609) target = $region84
      $region83: #{tpu_custom_call.1} parent=75 // pred_region
        %v612 = vld [vmem:[#allocation2] sm:$0xff]
        %v613 = vld [vmem:[#allocation2 + $0x8] sm:$0xff]
        %v614 = vld [vmem:[#allocation2 + $0x10] sm:$0xff]
        %v615 = vpack.c.bf16 %v613, %v612
        %v616 = vpack.c.bf16 %v614, %v614
        %v619 = vunpack.c.l.b16 %v615
        %v620 = vunpack.c.h.b16 %v615
        %v621 = vunpack.c.l.b16 %v616
        %v622 = vpack.c.b16 %v619, %v619
        %v623 = vpack.c.b16 %v620, %v620
        %v624 = vpack.c.b16 %v621, %v621
        %vm628 = vcmask 257024
        %629 = vst.msk [vmem:[#allocation3] sm:$0xf] %vm628, %v622
        %630 = vst.msk [vmem:[#allocation3 + $0x4] sm:$0xf] %vm628, %v623
        %631 = vst.msk [vmem:[#allocation3 + $0x8] sm:$0xf] %vm628, %v624
        %vm632 = vcmask 261120
        %633 = vst.msk [vmem:[#allocation4] sm:$0xff] %vm632, 0.0
        %634 = vst.msk [vmem:[#allocation4 + $0x8] sm:$0xff] %vm632, 0.0
        %635 = vst.msk [vmem:[#allocation4 + $0x10] sm:$0xff] %vm632, 0.0
      $region84: #{tpu_custom_call.1} parent=75 // pred_fallthru
        _
      %v636 = vld [vmem:[%s568] sm:$0xff]
      %v637 = vld [vmem:[%s568 + $0x8] sm:$0xff]
      %v638 = vld [vmem:[%s568 + $0x10] sm:$0xff]
      %v639 = vld [vmem:[%s568 + $0x18] sm:$0xff]
      %v640 = vld [vmem:[%s568 + $0x20] sm:$0xff]
      %v641 = vld [vmem:[%s568 + $0x28] sm:$0xff]
      %v642 = vld [vmem:[%s568 + $0x30] sm:$0xff]
      %v643 = vld [vmem:[%s568 + $0x38] sm:$0xff]
      %v644 = vld [vmem:[%s568 + $0x40] sm:$0xff]
      %v645 = vld [vmem:[%s568 + $0x48] sm:$0xff]
      %v646 = vld [vmem:[%s568 + $0x50] sm:$0xff]
      %v647 = vld [vmem:[%s568 + $0x58] sm:$0xff]
      %v648 = vld [vmem:[%s568 + $0x60] sm:$0xff]
      %v649 = vld [vmem:[%s568 + $0x68] sm:$0xff]
      %v650 = vld [vmem:[%s568 + $0x70] sm:$0xff]
      %v651 = vld [vmem:[%s568 + $0x78] sm:$0xff]
      %v652 = vld [vmem:[%s577] sm:$0xff]
      %v653 = vld [vmem:[%s577 + $0x8] sm:$0xff]
      %v654 = vld [vmem:[%s577 + $0x10] sm:$0xff]
      %v655 = vld [vmem:[%s577 + $0x18] sm:$0xff]
      %v656 = vld [vmem:[%s577 + $0x20] sm:$0xff]
      %v657 = vld [vmem:[%s577 + $0x28] sm:$0xff]
      %v658 = vld [vmem:[%s577 + $0x30] sm:$0xff]
      %v659 = vld [vmem:[%s577 + $0x38] sm:$0xff]
      %v660 = vld [vmem:[%s577 + $0x40] sm:$0xff]
      %v661 = vld [vmem:[%s577 + $0x48] sm:$0xff]
      %v662 = vld [vmem:[%s577 + $0x50] sm:$0xff]
      %v663 = vld [vmem:[%s577 + $0x58] sm:$0xff]
      %v664 = vld [vmem:[%s577 + $0x60] sm:$0xff]
      %v665 = vld [vmem:[%s577 + $0x68] sm:$0xff]
      %v666 = vld [vmem:[%s577 + $0x70] sm:$0xff]
      %v667 = vld [vmem:[%s577 + $0x78] sm:$0xff]
      %v668 = vlaneseq
      %v669 = vand.u32 %v668, 127
      %670 = vset.pattern.permute.xlu0 0
      %671 = vperm.xlu0 %670, %v636
      %v672 = vpop.permute.xlu0 %671
      %673 = vset.pattern.permute.xlu0 0
      %674 = vperm.xlu0 %673, %v637
      %v675 = vpop.permute.xlu0 %674
      %676 = vset.pattern.permute.xlu0 0
      %677 = vperm.xlu0 %676, %v638
      %v678 = vpop.permute.xlu0 %677
      %679 = vset.pattern.permute.xlu0 0
      %680 = vperm.xlu0 %679, %v639
      %v681 = vpop.permute.xlu0 %680
      %682 = vset.pattern.permute.xlu0 0
      %683 = vperm.xlu0 %682, %v640
      %v684 = vpop.permute.xlu0 %683
      %685 = vset.pattern.permute.xlu0 0
      %686 = vperm.xlu0 %685, %v641
      %v687 = vpop.permute.xlu0 %686
      %688 = vset.pattern.permute.xlu0 0
      %689 = vperm.xlu0 %688, %v642
      %v690 = vpop.permute.xlu0 %689
      %691 = vset.pattern.permute.xlu0 0
      %692 = vperm.xlu0 %691, %v643
      %v693 = vpop.permute.xlu0 %692
      %694 = vset.pattern.permute.xlu0 0
      %695 = vperm.xlu0 %694, %v644
      %v696 = vpop.permute.xlu0 %695
      %697 = vset.pattern.permute.xlu0 0
      %698 = vperm.xlu0 %697, %v645
      %v699 = vpop.permute.xlu0 %698
      %700 = vset.pattern.permute.xlu0 0
      %701 = vperm.xlu0 %700, %v646
      %v702 = vpop.permute.xlu0 %701
      %703 = vset.pattern.permute.xlu0 0
      %704 = vperm.xlu0 %703, %v647
      %v705 = vpop.permute.xlu0 %704
      %706 = vset.pattern.permute.xlu0 0
      %707 = vperm.xlu0 %706, %v648
      %v708 = vpop.permute.xlu0 %707
      %709 = vset.pattern.permute.xlu0 0
      %710 = vperm.xlu0 %709, %v649
      %v711 = vpop.permute.xlu0 %710
      %712 = vset.pattern.permute.xlu0 0
      %713 = vperm.xlu0 %712, %v650
      %v714 = vpop.permute.xlu0 %713
      %715 = vset.pattern.permute.xlu0 0
      %716 = vperm.xlu0 %715, %v651
      %v717 = vpop.permute.xlu0 %716
      %vm718 = vcmp.eq.s32.totalorder %v669, %v672
      %vm719 = vcmp.eq.s32.totalorder %v669, %v675
      %vm720 = vcmp.eq.s32.totalorder %v669, %v678
      %vm721 = vcmp.eq.s32.totalorder %v669, %v681
      %vm722 = vcmp.eq.s32.totalorder %v669, %v684
      %vm723 = vcmp.eq.s32.totalorder %v669, %v687
      %vm724 = vcmp.eq.s32.totalorder %v669, %v690
      %vm725 = vcmp.eq.s32.totalorder %v669, %v693
      %vm726 = vcmp.eq.s32.totalorder %v669, %v696
      %vm727 = vcmp.eq.s32.totalorder %v669, %v699
      %vm728 = vcmp.eq.s32.totalorder %v669, %v702
      %vm729 = vcmp.eq.s32.totalorder %v669, %v705
      %vm730 = vcmp.eq.s32.totalorder %v669, %v708
      %vm731 = vcmp.eq.s32.totalorder %v669, %v711
      %vm732 = vcmp.eq.s32.totalorder %v669, %v714
      %vm733 = vcmp.eq.s32.totalorder %v669, %v717
      %v734 = vsel %vm718, 1.0, 0.0
      %v735 = vsel %vm719, 1.0, 0.0
      %v736 = vsel %vm720, 1.0, 0.0
      %v737 = vsel %vm721, 1.0, 0.0
      %v738 = vsel %vm722, 1.0, 0.0
      %v739 = vsel %vm723, 1.0, 0.0
      %v740 = vsel %vm724, 1.0, 0.0
      %v741 = vsel %vm725, 1.0, 0.0
      %v742 = vsel %vm726, 1.0, 0.0
      %v743 = vsel %vm727, 1.0, 0.0
      %v744 = vsel %vm728, 1.0, 0.0
      %v745 = vsel %vm729, 1.0, 0.0
      %v746 = vsel %vm730, 1.0, 0.0
      %v747 = vsel %vm731, 1.0, 0.0
      %v748 = vsel %vm732, 1.0, 0.0
      %v749 = vsel %vm733, 1.0, 0.0
      %v750 = vpack.c.bf16 %v735, %v734
      %v751 = vpack.c.bf16 %v737, %v736
      %v752 = vpack.c.bf16 %v739, %v738
      %v753 = vpack.c.bf16 %v741, %v740
      %v754 = vpack.c.bf16 %v743, %v742
      %v755 = vpack.c.bf16 %v745, %v744
      %v756 = vpack.c.bf16 %v747, %v746
      %v757 = vpack.c.bf16 %v749, %v748
      %v758 = vld [vmem:[#allocation3] sm:$0xf]
      %v759 = vld [vmem:[#allocation3 + $0x4] sm:$0xf]
      %v760 = vld [vmem:[#allocation3 + $0x8] sm:$0xf]
      %v764 = vunpack.c.l.b16 %v758
      %v765 = vunpack.c.l.b16 %v759
      %v766 = vunpack.c.l.b16 %v760
      %v767 = vpack.c.b16 %v765, %v764
      %v768 = vpack.c.b16 %v766, %v766
      %vm770 = vcmask 195584
      %v772 = vsel %vm770, %v750, 0
      %v775 = vsel %vm770, %v751, 0
      %v778 = vsel %vm770, %v752, 0
      %v781 = vsel %vm770, %v753, 0
      %v784 = vsel %vm770, %v754, 0
      %v787 = vsel %vm770, %v755, 0
      %v790 = vsel %vm770, %v756, 0
      %v793 = vsel %vm770, %v757, 0
      %vm795 = vcmask 1043456
      %v797 = vsel %vm795, %v768, 0
      %799 = vmatprep.subr.bf16.mxu0 0
      %800 = vmatpush1.bf16.msra.mxu0 0
      %801 = vmatprep.subr.bf16.mxu0 0
      %802 = vmatpush1.bf16.msra.mxu0 0
      %803 = vmatprep.subr.bf16.mxu0 0
      %804 = vmatpush1.bf16.msra.mxu0 0
      %805 = vmatprep.subr.bf16.mxu0 0
      %806 = vmatpush1.bf16.msra.mxu0 0
      %807 = vmatprep.subr.bf16.mxu0 0
      %808 = vmatpush1.bf16.msra.mxu0 0
      %809 = vmatprep.subr.bf16.mxu0 0
      %810 = vmatpush1.bf16.msra.mxu0 0
      %811 = vmatprep.subr.bf16.mxu0 0
      %812 = vmatpush1.bf16.msra.mxu0 %v797
      %813 = vmatprep.subr.bf16.mxu0 0
      %814 = vmatpush1.bf16.msra.mxu0 %v767
      %815 = vmatprep.subr.bf16.mxu0 0
      %816 = vmatpush2.bf16.msra.mxu0 0
      %817 = vmatprep.subr.bf16.mxu0 0
      %818 = vmatpush2.bf16.msra.mxu0 0
      %819 = vmatprep.subr.bf16.mxu0 0
      %820 = vmatpush2.bf16.msra.mxu0 0
      %821 = vmatprep.subr.bf16.mxu0 0
      %822 = vmatpush2.bf16.msra.mxu0 0
      %823 = vmatprep.subr.bf16.mxu0 0
      %824 = vmatpush2.bf16.msra.mxu0 0
      %825 = vmatprep.subr.bf16.mxu0 0
      %826 = vmatpush2.bf16.msra.mxu0 0
      %827 = vmatprep.subr.bf16.mxu0 0
      %828 = vmatpush2.bf16.msra.mxu0 0
      %829 = vmatprep.subr.bf16.mxu0 0
      %830 = vmatpush2.bf16.msra.mxu0 0
      %831 = vmatprep.mubr.bf16.mxu0 0
      %832 = vmatmul.mubr.bf16.gmra.mxu0 %v772
      %v833 = vpop.f32.mrf.mxu0
      %v834 = vadd.f32 0.0, %v833
      %v835 = vpop.f32.mrf.mxu0
      %v836 = vpop.f32.mrf.mxu0
      %v837 = vadd.f32 0.0, %v836
      %v838 = vpop.f32.mrf.mxu0
      %839 = vmatprep.mubr.bf16.mxu0 0
      %840 = vmatmul.mubr.bf16.gmra.mxu0 %v775
      %v841 = vpop.f32.mrf.mxu0
      %v842 = vadd.f32 0.0, %v841
      %v843 = vpop.f32.mrf.mxu0
      %v844 = vpop.f32.mrf.mxu0
      %v845 = vadd.f32 0.0, %v844
      %v846 = vpop.f32.mrf.mxu0
      %847 = vmatprep.mubr.bf16.mxu0 0
      %848 = vmatmul.mubr.bf16.gmra.mxu0 %v778
      %v849 = vpop.f32.mrf.mxu0
      %v850 = vadd.f32 0.0, %v849
      %v851 = vpop.f32.mrf.mxu0
      %v852 = vpop.f32.mrf.mxu0
      %v853 = vadd.f32 0.0, %v852
      %v854 = vpop.f32.mrf.mxu0
      %855 = vmatprep.mubr.bf16.mxu0 0
      %856 = vmatmul.mubr.bf16.gmra.mxu0 %v781
      %v857 = vpop.f32.mrf.mxu0
      %v858 = vadd.f32 0.0, %v857
      %v859 = vpop.f32.mrf.mxu0
      %v860 = vpop.f32.mrf.mxu0
      %v861 = vadd.f32 0.0, %v860
      %v862 = vpop.f32.mrf.mxu0
      %863 = vmatprep.mubr.bf16.mxu0 0
      %864 = vmatmul.mubr.bf16.gmra.mxu0 %v784
      %v865 = vpop.f32.mrf.mxu0
      %v866 = vadd.f32 0.0, %v865
      %v867 = vpop.f32.mrf.mxu0
      %v868 = vpop.f32.mrf.mxu0
      %v869 = vadd.f32 0.0, %v868
      %v870 = vpop.f32.mrf.mxu0
      %871 = vmatprep.mubr.bf16.mxu0 0
      %872 = vmatmul.mubr.bf16.gmra.mxu0 %v787
      %v873 = vpop.f32.mrf.mxu0
      %v874 = vadd.f32 0.0, %v873
      %v875 = vpop.f32.mrf.mxu0
      %v876 = vpop.f32.mrf.mxu0
      %v877 = vadd.f32 0.0, %v876
      %v878 = vpop.f32.mrf.mxu0
      %879 = vmatprep.mubr.bf16.mxu0 0
      %880 = vmatmul.mubr.bf16.gmra.mxu0 %v790
      %v881 = vpop.f32.mrf.mxu0
      %v882 = vadd.f32 0.0, %v881
      %v883 = vpop.f32.mrf.mxu0
      %v884 = vpop.f32.mrf.mxu0
      %v885 = vadd.f32 0.0, %v884
      %v886 = vpop.f32.mrf.mxu0
      %887 = vmatprep.mubr.bf16.mxu0 0
      %888 = vmatmul.mubr.bf16.gmra.mxu0 %v793
      %v889 = vpop.f32.mrf.mxu0
      %v890 = vadd.f32 0.0, %v889
      %v891 = vpop.f32.mrf.mxu0
      %v892 = vpop.f32.mrf.mxu0
      %v893 = vadd.f32 0.0, %v892
      %v894 = vpop.f32.mrf.mxu0
      %895 = vdwg.mxu0
      %v896 = vld [vmem:[%s562] sm:$0xff]
      %v897 = vld [vmem:[%s562 + $0x8] sm:$0xff]
      %v898 = vld [vmem:[%s562 + $0x10] sm:$0xff]
      %v899 = vld [vmem:[%s562 + $0x18] sm:$0xff]
      %v900 = vld [vmem:[%s562 + $0x20] sm:$0xff]
      %v901 = vld [vmem:[%s562 + $0x28] sm:$0xff]
      %v902 = vld [vmem:[%s562 + $0x30] sm:$0xff]
      %v903 = vld [vmem:[%s562 + $0x38] sm:$0xff]
      %v904 = vld [vmem:[%s562 + $0x40] sm:$0xff]
      %v905 = vld [vmem:[%s562 + $0x48] sm:$0xff]
      %v906 = vld [vmem:[%s562 + $0x50] sm:$0xff]
      %v907 = vld [vmem:[%s562 + $0x58] sm:$0xff]
      %v908 = vld [vmem:[%s562 + $0x60] sm:$0xff]
      %v909 = vld [vmem:[%s562 + $0x68] sm:$0xff]
      %v910 = vld [vmem:[%s562 + $0x70] sm:$0xff]
      %v911 = vld [vmem:[%s562 + $0x78] sm:$0xff]
      %928 = vrot.lane.b32.xlu0 %v896, 32
      %v929 = vpop.permute.xlu0 %928
      %930 = vrot.lane.b32.xlu0 %v897, 32
      %v931 = vpop.permute.xlu0 %930
      %932 = vrot.lane.b32.xlu0 %v898, 32
      %v933 = vpop.permute.xlu0 %932
      %934 = vrot.lane.b32.xlu0 %v899, 32
      %v935 = vpop.permute.xlu0 %934
      %936 = vrot.lane.b32.xlu0 %v900, 32
      %v937 = vpop.permute.xlu0 %936
      %938 = vrot.lane.b32.xlu0 %v901, 32
      %v939 = vpop.permute.xlu0 %938
      %940 = vrot.lane.b32.xlu0 %v902, 32
      %v941 = vpop.permute.xlu0 %940
      %942 = vrot.lane.b32.xlu0 %v903, 32
      %v943 = vpop.permute.xlu0 %942
      %944 = vrot.lane.b32.xlu0 %v904, 32
      %v945 = vpop.permute.xlu0 %944
      %946 = vrot.lane.b32.xlu0 %v905, 32
      %v947 = vpop.permute.xlu0 %946
      %948 = vrot.lane.b32.xlu0 %v906, 32
      %v949 = vpop.permute.xlu0 %948
      %950 = vrot.lane.b32.xlu0 %v907, 32
      %v951 = vpop.permute.xlu0 %950
      %952 = vrot.lane.b32.xlu0 %v908, 32
      %v953 = vpop.permute.xlu0 %952
      %954 = vrot.lane.b32.xlu0 %v909, 32
      %v955 = vpop.permute.xlu0 %954
      %956 = vrot.lane.b32.xlu0 %v910, 32
      %v957 = vpop.permute.xlu0 %956
      %958 = vrot.lane.b32.xlu0 %v911, 32
      %v959 = vpop.permute.xlu0 %958
      %vm976 = vcmask 261120
      %v977 = vsel %vm976, %v834, %v929
      %v978 = vsel %vm976, %v837, %v931
      %v979 = vsel %vm976, %v842, %v933
      %v980 = vsel %vm976, %v845, %v935
      %v981 = vsel %vm976, %v850, %v937
      %v982 = vsel %vm976, %v853, %v939
      %v983 = vsel %vm976, %v858, %v941
      %v984 = vsel %vm976, %v861, %v943
      %v985 = vsel %vm976, %v866, %v945
      %v986 = vsel %vm976, %v869, %v947
      %v987 = vsel %vm976, %v874, %v949
      %v988 = vsel %vm976, %v877, %v951
      %v989 = vsel %vm976, %v882, %v953
      %v990 = vsel %vm976, %v885, %v955
      %v991 = vsel %vm976, %v890, %v957
      %v992 = vsel %vm976, %v893, %v959
      %v993 = vpack.c.bf16 %v978, %v977
      %v994 = vpack.c.bf16 %v980, %v979
      %v995 = vpack.c.bf16 %v982, %v981
      %v996 = vpack.c.bf16 %v984, %v983
      %v997 = vpack.c.bf16 %v986, %v985
      %v998 = vpack.c.bf16 %v988, %v987
      %v999 = vpack.c.bf16 %v990, %v989
      %v1000 = vpack.c.bf16 %v992, %v991
      %v1001 = vld [vmem:[%s583] sm:$0xf]
      %v1002 = vld [vmem:[%s583 + $0x4] sm:$0xf]
      %v1003 = vld [vmem:[%s583 + $0x8] sm:$0xf]
      %v1004 = vld [vmem:[%s583 + $0xc] sm:$0xf]
      %v1005 = vld [vmem:[%s583 + $0x10] sm:$0x3]
      %v1006 = vld [vmem:[%s586] sm:$0x1]
      %v1008 = vlaneseq
      %v1009 = vshrl.u32 %v1008, 7
      %v1010 = vsub.s32 0, %v1009
      %v1011 = vrot.slane %v1006, %v1010
      %v1018 = vunpack.c.l.b16 %v1001
      %v1019 = vunpack.c.l.b16 %v1002
      %v1020 = vunpack.c.l.b16 %v1003
      %v1021 = vunpack.c.l.b16 %v1004
      %v1022 = vunpack.c.l.b16 %v1005
      %v1023 = vpack.c.b16 %v1019, %v1018
      %v1024 = vpack.c.b16 %v1021, %v1020
      %v1025 = vpack.c.b16 %v1022, %v1022
      %vm1028 = vcmask 293888
      %v1030 = vsel %vm1028, %v993, 0
      %v1033 = vsel %vm1028, %v994, 0
      %v1036 = vsel %vm1028, %v995, 0
      %v1039 = vsel %vm1028, %v996, 0
      %v1042 = vsel %vm1028, %v997, 0
      %v1045 = vsel %vm1028, %v998, 0
      %v1048 = vsel %vm1028, %v999, 0
      %v1051 = vsel %vm1028, %v1000, 0
      %vm1053 = vcmask 1041408
      %v1055 = vsel %vm1053, %v1025, 0
      %1057 = vmatprep.subr.bf16.mxu0 0
      %1058 = vmatpush1.bf16.msra.mxu0 0
      %1059 = vmatprep.subr.bf16.mxu0 0
      %1060 = vmatpush1.bf16.msra.mxu0 0
      %1061 = vmatprep.subr.bf16.mxu0 0
      %1062 = vmatpush1.bf16.msra.mxu0 0
      %1063 = vmatprep.subr.bf16.mxu0 0
      %1064 = vmatpush1.bf16.msra.mxu0 0
      %1065 = vmatprep.subr.bf16.mxu0 0
      %1066 = vmatpush1.bf16.msra.mxu0 0
      %1067 = vmatprep.subr.bf16.mxu0 0
      %1068 = vmatpush1.bf16.msra.mxu0 %v1055
      %1069 = vmatprep.subr.bf16.mxu0 0
      %1070 = vmatpush1.bf16.msra.mxu0 %v1024
      %1071 = vmatprep.subr.bf16.mxu0 0
      %1072 = vmatpush1.bf16.msra.mxu0 %v1023
      %1073 = vmatprep.subr.bf16.mxu0 0
      %1074 = vmatpush2.bf16.msra.mxu0 0
      %1075 = vmatprep.subr.bf16.mxu0 0
      %1076 = vmatpush2.bf16.msra.mxu0 0
      %1077 = vmatprep.subr.bf16.mxu0 0
      %1078 = vmatpush2.bf16.msra.mxu0 0
      %1079 = vmatprep.subr.bf16.mxu0 0
      %1080 = vmatpush2.bf16.msra.mxu0 0
      %1081 = vmatprep.subr.bf16.mxu0 0
      %1082 = vmatpush2.bf16.msra.mxu0 0
      %1083 = vmatprep.subr.bf16.mxu0 0
      %1084 = vmatpush2.bf16.msra.mxu0 0
      %1085 = vmatprep.subr.bf16.mxu0 0
      %1086 = vmatpush2.bf16.msra.mxu0 0
      %1087 = vmatprep.subr.bf16.mxu0 0
      %1088 = vmatpush2.bf16.msra.mxu0 0
      %1089 = vmatprep.mubr.bf16.mxu0 0
      %1090 = vmatmul.mubr.bf16.gmra.mxu0 %v1030
      %v1091 = vpop.f32.mrf.mxu0
      %v1092 = vadd.f32 %v1011, %v1091
      %v1093 = vpop.f32.mrf.mxu0
      %v1094 = vpop.f32.mrf.mxu0
      %v1095 = vadd.f32 %v1011, %v1094
      %v1096 = vpop.f32.mrf.mxu0
      %1097 = vmatprep.mubr.bf16.mxu0 0
      %1098 = vmatmul.mubr.bf16.gmra.mxu0 %v1033
      %v1099 = vpop.f32.mrf.mxu0
      %v1100 = vadd.f32 %v1011, %v1099
      %v1101 = vpop.f32.mrf.mxu0
      %v1102 = vpop.f32.mrf.mxu0
      %v1103 = vadd.f32 %v1011, %v1102
      %v1104 = vpop.f32.mrf.mxu0
      %1105 = vmatprep.mubr.bf16.mxu0 0
      %1106 = vmatmul.mubr.bf16.gmra.mxu0 %v1036
      %v1107 = vpop.f32.mrf.mxu0
      %v1108 = vadd.f32 %v1011, %v1107
      %v1109 = vpop.f32.mrf.mxu0
      %v1110 = vpop.f32.mrf.mxu0
      %v1111 = vadd.f32 %v1011, %v1110
      %v1112 = vpop.f32.mrf.mxu0
      %1113 = vmatprep.mubr.bf16.mxu0 0
      %1114 = vmatmul.mubr.bf16.gmra.mxu0 %v1039
      %v1115 = vpop.f32.mrf.mxu0
      %v1116 = vadd.f32 %v1011, %v1115
      %v1117 = vpop.f32.mrf.mxu0
      %v1118 = vpop.f32.mrf.mxu0
      %v1119 = vadd.f32 %v1011, %v1118
      %v1120 = vpop.f32.mrf.mxu0
      %1121 = vmatprep.mubr.bf16.mxu0 0
      %1122 = vmatmul.mubr.bf16.gmra.mxu0 %v1042
      %v1123 = vpop.f32.mrf.mxu0
      %v1124 = vadd.f32 %v1011, %v1123
      %v1125 = vpop.f32.mrf.mxu0
      %v1126 = vpop.f32.mrf.mxu0
      %v1127 = vadd.f32 %v1011, %v1126
      %v1128 = vpop.f32.mrf.mxu0
      %1129 = vmatprep.mubr.bf16.mxu0 0
      %1130 = vmatmul.mubr.bf16.gmra.mxu0 %v1045
      %v1131 = vpop.f32.mrf.mxu0
      %v1132 = vadd.f32 %v1011, %v1131
      %v1133 = vpop.f32.mrf.mxu0
      %v1134 = vpop.f32.mrf.mxu0
      %v1135 = vadd.f32 %v1011, %v1134
      %v1136 = vpop.f32.mrf.mxu0
      %1137 = vmatprep.mubr.bf16.mxu0 0
      %1138 = vmatmul.mubr.bf16.gmra.mxu0 %v1048
      %v1139 = vpop.f32.mrf.mxu0
      %v1140 = vadd.f32 %v1011, %v1139
      %v1141 = vpop.f32.mrf.mxu0
      %v1142 = vpop.f32.mrf.mxu0
      %v1143 = vadd.f32 %v1011, %v1142
      %v1144 = vpop.f32.mrf.mxu0
      %1145 = vmatprep.mubr.bf16.mxu0 0
      %1146 = vmatmul.mubr.bf16.gmra.mxu0 %v1051
      %v1147 = vpop.f32.mrf.mxu0
      %v1148 = vadd.f32 %v1011, %v1147
      %v1149 = vpop.f32.mrf.mxu0
      %v1150 = vpop.f32.mrf.mxu0
      %v1151 = vadd.f32 %v1011, %v1150
      %v1152 = vpop.f32.mrf.mxu0
      %1153 = vdwg.mxu0
      %v1154 = vmul.u32 %v652, 32
      %v1155 = vmul.u32 %v653, 32
      %v1156 = vmul.u32 %v654, 32
      %v1157 = vmul.u32 %v655, 32
      %v1158 = vmul.u32 %v656, 32
      %v1159 = vmul.u32 %v657, 32
      %v1160 = vmul.u32 %v658, 32
      %v1161 = vmul.u32 %v659, 32
      %v1162 = vmul.u32 %v660, 32
      %v1163 = vmul.u32 %v661, 32
      %v1164 = vmul.u32 %v662, 32
      %v1165 = vmul.u32 %v663, 32
      %v1166 = vmul.u32 %v664, 32
      %v1167 = vmul.u32 %v665, 32
      %v1168 = vmul.u32 %v666, 32
      %v1169 = vmul.u32 %v667, 32
      %1170 = vset.pattern.permute.xlu0 0
      %1171 = vperm.xlu0 %1170, %v1154
      %v1172 = vpop.permute.xlu0 %1171
      %1173 = vset.pattern.permute.xlu0 0
      %1174 = vperm.xlu0 %1173, %v1155
      %v1175 = vpop.permute.xlu0 %1174
      %1176 = vset.pattern.permute.xlu0 0
      %1177 = vperm.xlu0 %1176, %v1156
      %v1178 = vpop.permute.xlu0 %1177
      %1179 = vset.pattern.permute.xlu0 0
      %1180 = vperm.xlu0 %1179, %v1157
      %v1181 = vpop.permute.xlu0 %1180
      %1182 = vset.pattern.permute.xlu0 0
      %1183 = vperm.xlu0 %1182, %v1158
      %v1184 = vpop.permute.xlu0 %1183
      %1185 = vset.pattern.permute.xlu0 0
      %1186 = vperm.xlu0 %1185, %v1159
      %v1187 = vpop.permute.xlu0 %1186
      %1188 = vset.pattern.permute.xlu0 0
      %1189 = vperm.xlu0 %1188, %v1160
      %v1190 = vpop.permute.xlu0 %1189
      %1191 = vset.pattern.permute.xlu0 0
      %1192 = vperm.xlu0 %1191, %v1161
      %v1193 = vpop.permute.xlu0 %1192
      %1194 = vset.pattern.permute.xlu0 0
      %1195 = vperm.xlu0 %1194, %v1162
      %v1196 = vpop.permute.xlu0 %1195
      %1197 = vset.pattern.permute.xlu0 0
      %1198 = vperm.xlu0 %1197, %v1163
      %v1199 = vpop.permute.xlu0 %1198
      %1200 = vset.pattern.permute.xlu0 0
      %1201 = vperm.xlu0 %1200, %v1164
      %v1202 = vpop.permute.xlu0 %1201
      %1203 = vset.pattern.permute.xlu0 0
      %1204 = vperm.xlu0 %1203, %v1165
      %v1205 = vpop.permute.xlu0 %1204
      %1206 = vset.pattern.permute.xlu0 0
      %1207 = vperm.xlu0 %1206, %v1166
      %v1208 = vpop.permute.xlu0 %1207
      %1209 = vset.pattern.permute.xlu0 0
      %1210 = vperm.xlu0 %1209, %v1167
      %v1211 = vpop.permute.xlu0 %1210
      %1212 = vset.pattern.permute.xlu0 0
      %1213 = vperm.xlu0 %1212, %v1168
      %v1214 = vpop.permute.xlu0 %1213
      %1215 = vset.pattern.permute.xlu0 0
      %1216 = vperm.xlu0 %1215, %v1169
      %v1217 = vpop.permute.xlu0 %1216
      %vm1218 = vcmp.ge.s32.totalorder %v669, %v1172
      %vm1219 = vcmp.ge.s32.totalorder %v669, %v1175
      %vm1220 = vcmp.ge.s32.totalorder %v669, %v1178
      %vm1221 = vcmp.ge.s32.totalorder %v669, %v1181
      %vm1222 = vcmp.ge.s32.totalorder %v669, %v1184
      %vm1223 = vcmp.ge.s32.totalorder %v669, %v1187
      %vm1224 = vcmp.ge.s32.totalorder %v669, %v1190
      %vm1225 = vcmp.ge.s32.totalorder %v669, %v1193
      %vm1226 = vcmp.ge.s32.totalorder %v669, %v1196
      %vm1227 = vcmp.ge.s32.totalorder %v669, %v1199
      %vm1228 = vcmp.ge.s32.totalorder %v669, %v1202
      %vm1229 = vcmp.ge.s32.totalorder %v669, %v1205
      %vm1230 = vcmp.ge.s32.totalorder %v669, %v1208
      %vm1231 = vcmp.ge.s32.totalorder %v669, %v1211
      %vm1232 = vcmp.ge.s32.totalorder %v669, %v1214
      %vm1233 = vcmp.ge.s32.totalorder %v669, %v1217
      %v1234 = vadd.s32 %v1154, 32
      %v1235 = vadd.s32 %v1155, 32
      %v1236 = vadd.s32 %v1156, 32
      %v1237 = vadd.s32 %v1157, 32
      %v1238 = vadd.s32 %v1158, 32
      %v1239 = vadd.s32 %v1159, 32
      %v1240 = vadd.s32 %v1160, 32
      %v1241 = vadd.s32 %v1161, 32
      %v1242 = vadd.s32 %v1162, 32
      %v1243 = vadd.s32 %v1163, 32
      %v1244 = vadd.s32 %v1164, 32
      %v1245 = vadd.s32 %v1165, 32
      %v1246 = vadd.s32 %v1166, 32
      %v1247 = vadd.s32 %v1167, 32
      %v1248 = vadd.s32 %v1168, 32
      %v1249 = vadd.s32 %v1169, 32
      %1250 = vset.pattern.permute.xlu0 0
      %1251 = vperm.xlu0 %1250, %v1234
      %v1252 = vpop.permute.xlu0 %1251
      %1253 = vset.pattern.permute.xlu0 0
      %1254 = vperm.xlu0 %1253, %v1235
      %v1255 = vpop.permute.xlu0 %1254
      %1256 = vset.pattern.permute.xlu0 0
      %1257 = vperm.xlu0 %1256, %v1236
      %v1258 = vpop.permute.xlu0 %1257
      %1259 = vset.pattern.permute.xlu0 0
      %1260 = vperm.xlu0 %1259, %v1237
      %v1261 = vpop.permute.xlu0 %1260
      %1262 = vset.pattern.permute.xlu0 0
      %1263 = vperm.xlu0 %1262, %v1238
      %v1264 = vpop.permute.xlu0 %1263
      %1265 = vset.pattern.permute.xlu0 0
      %1266 = vperm.xlu0 %1265, %v1239
      %v1267 = vpop.permute.xlu0 %1266
      %1268 = vset.pattern.permute.xlu0 0
      %1269 = vperm.xlu0 %1268, %v1240
      %v1270 = vpop.permute.xlu0 %1269
      %1271 = vset.pattern.permute.xlu0 0
      %1272 = vperm.xlu0 %1271, %v1241
      %v1273 = vpop.permute.xlu0 %1272
      %1274 = vset.pattern.permute.xlu0 0
      %1275 = vperm.xlu0 %1274, %v1242
      %v1276 = vpop.permute.xlu0 %1275
      %1277 = vset.pattern.permute.xlu0 0
      %1278 = vperm.xlu0 %1277, %v1243
      %v1279 = vpop.permute.xlu0 %1278
      %1280 = vset.pattern.permute.xlu0 0
      %1281 = vperm.xlu0 %1280, %v1244
      %v1282 = vpop.permute.xlu0 %1281
      %1283 = vset.pattern.permute.xlu0 0
      %1284 = vperm.xlu0 %1283, %v1245
      %v1285 = vpop.permute.xlu0 %1284
      %1286 = vset.pattern.permute.xlu0 0
      %1287 = vperm.xlu0 %1286, %v1246
      %v1288 = vpop.permute.xlu0 %1287
      %1289 = vset.pattern.permute.xlu0 0
      %1290 = vperm.xlu0 %1289, %v1247
      %v1291 = vpop.permute.xlu0 %1290
      %1292 = vset.pattern.permute.xlu0 0
      %1293 = vperm.xlu0 %1292, %v1248
      %v1294 = vpop.permute.xlu0 %1293
      %1295 = vset.pattern.permute.xlu0 0
      %1296 = vperm.xlu0 %1295, %v1249
      %v1297 = vpop.permute.xlu0 %1296
      %vm1298 = vcmp.lt.s32.totalorder %v669, %v1252
      %vm1299 = vcmp.lt.s32.totalorder %v669, %v1255
      %vm1300 = vcmp.lt.s32.totalorder %v669, %v1258
      %vm1301 = vcmp.lt.s32.totalorder %v669, %v1261
      %vm1302 = vcmp.lt.s32.totalorder %v669, %v1264
      %vm1303 = vcmp.lt.s32.totalorder %v669, %v1267
      %vm1304 = vcmp.lt.s32.totalorder %v669, %v1270
      %vm1305 = vcmp.lt.s32.totalorder %v669, %v1273
      %vm1306 = vcmp.lt.s32.totalorder %v669, %v1276
      %vm1307 = vcmp.lt.s32.totalorder %v669, %v1279
      %vm1308 = vcmp.lt.s32.totalorder %v669, %v1282
      %vm1309 = vcmp.lt.s32.totalorder %v669, %v1285
      %vm1310 = vcmp.lt.s32.totalorder %v669, %v1288
      %vm1311 = vcmp.lt.s32.totalorder %v669, %v1291
      %vm1312 = vcmp.lt.s32.totalorder %v669, %v1294
      %vm1313 = vcmp.lt.s32.totalorder %v669, %v1297
      %vm1314 = vmand %vm1218, %vm1298
      %vm1315 = vmand %vm1219, %vm1299
      %vm1316 = vmand %vm1220, %vm1300
      %vm1317 = vmand %vm1221, %vm1301
      %vm1318 = vmand %vm1222, %vm1302
      %vm1319 = vmand %vm1223, %vm1303
      %vm1320 = vmand %vm1224, %vm1304
      %vm1321 = vmand %vm1225, %vm1305
      %vm1322 = vmand %vm1226, %vm1306
      %vm1323 = vmand %vm1227, %vm1307
      %vm1324 = vmand %vm1228, %vm1308
      %vm1325 = vmand %vm1229, %vm1309
      %vm1326 = vmand %vm1230, %vm1310
      %vm1327 = vmand %vm1231, %vm1311
      %vm1328 = vmand %vm1232, %vm1312
      %vm1329 = vmand %vm1233, %vm1313
      %v1330 = vsel %vm1314, 1.0, 0.0
      %v1331 = vsel %vm1315, 1.0, 0.0
      %v1332 = vsel %vm1316, 1.0, 0.0
      %v1333 = vsel %vm1317, 1.0, 0.0
      %v1334 = vsel %vm1318, 1.0, 0.0
      %v1335 = vsel %vm1319, 1.0, 0.0
      %v1336 = vsel %vm1320, 1.0, 0.0
      %v1337 = vsel %vm1321, 1.0, 0.0
      %v1338 = vsel %vm1322, 1.0, 0.0
      %v1339 = vsel %vm1323, 1.0, 0.0
      %v1340 = vsel %vm1324, 1.0, 0.0
      %v1341 = vsel %vm1325, 1.0, 0.0
      %v1342 = vsel %vm1326, 1.0, 0.0
      %v1343 = vsel %vm1327, 1.0, 0.0
      %v1344 = vsel %vm1328, 1.0, 0.0
      %v1345 = vsel %vm1329, 1.0, 0.0
      %v1346 = vmul.f32 %v1092, %v1330
      %v1347 = vmul.f32 %v1095, %v1331
      %v1348 = vmul.f32 %v1100, %v1332
      %v1349 = vmul.f32 %v1103, %v1333
      %v1350 = vmul.f32 %v1108, %v1334
      %v1351 = vmul.f32 %v1111, %v1335
      %v1352 = vmul.f32 %v1116, %v1336
      %v1353 = vmul.f32 %v1119, %v1337
      %v1354 = vmul.f32 %v1124, %v1338
      %v1355 = vmul.f32 %v1127, %v1339
      %v1356 = vmul.f32 %v1132, %v1340
      %v1357 = vmul.f32 %v1135, %v1341
      %v1358 = vmul.f32 %v1140, %v1342
      %v1359 = vmul.f32 %v1143, %v1343
      %v1360 = vmul.f32 %v1148, %v1344
      %v1361 = vmul.f32 %v1151, %v1345
      %1378 = vrot.lane.b32.xlu0 %v1346, 96
      %v1379 = vpop.permute.xlu0 %1378
      %1380 = vrot.lane.b32.xlu0 %v1347, 96
      %v1381 = vpop.permute.xlu0 %1380
      %1382 = vrot.lane.b32.xlu0 %v1348, 96
      %v1383 = vpop.permute.xlu0 %1382
      %1384 = vrot.lane.b32.xlu0 %v1349, 96
      %v1385 = vpop.permute.xlu0 %1384
      %1386 = vrot.lane.b32.xlu0 %v1350, 96
      %v1387 = vpop.permute.xlu0 %1386
      %1388 = vrot.lane.b32.xlu0 %v1351, 96
      %v1389 = vpop.permute.xlu0 %1388
      %1390 = vrot.lane.b32.xlu0 %v1352, 96
      %v1391 = vpop.permute.xlu0 %1390
      %1392 = vrot.lane.b32.xlu0 %v1353, 96
      %v1393 = vpop.permute.xlu0 %1392
      %1394 = vrot.lane.b32.xlu0 %v1354, 96
      %v1395 = vpop.permute.xlu0 %1394
      %1396 = vrot.lane.b32.xlu0 %v1355, 96
      %v1397 = vpop.permute.xlu0 %1396
      %1398 = vrot.lane.b32.xlu0 %v1356, 96
      %v1399 = vpop.permute.xlu0 %1398
      %1400 = vrot.lane.b32.xlu0 %v1357, 96
      %v1401 = vpop.permute.xlu0 %1400
      %1402 = vrot.lane.b32.xlu0 %v1358, 96
      %v1403 = vpop.permute.xlu0 %1402
      %1404 = vrot.lane.b32.xlu0 %v1359, 96
      %v1405 = vpop.permute.xlu0 %1404
      %1406 = vrot.lane.b32.xlu0 %v1360, 96
      %v1407 = vpop.permute.xlu0 %1406
      %1408 = vrot.lane.b32.xlu0 %v1361, 96
      %v1409 = vpop.permute.xlu0 %1408
      %v1426 = vadd.f32 %v1346, %v1379
      %v1427 = vadd.f32 %v1347, %v1381
      %v1428 = vadd.f32 %v1348, %v1383
      %v1429 = vadd.f32 %v1349, %v1385
      %v1430 = vadd.f32 %v1350, %v1387
      %v1431 = vadd.f32 %v1351, %v1389
      %v1432 = vadd.f32 %v1352, %v1391
      %v1433 = vadd.f32 %v1353, %v1393
      %v1434 = vadd.f32 %v1354, %v1395
      %v1435 = vadd.f32 %v1355, %v1397
      %v1436 = vadd.f32 %v1356, %v1399
      %v1437 = vadd.f32 %v1357, %v1401
      %v1438 = vadd.f32 %v1358, %v1403
      %v1439 = vadd.f32 %v1359, %v1405
      %v1440 = vadd.f32 %v1360, %v1407
      %v1441 = vadd.f32 %v1361, %v1409
      %1442 = vrot.lane.b32.xlu0 %v1346, 64
      %v1443 = vpop.permute.xlu0 %1442
      %1444 = vrot.lane.b32.xlu0 %v1347, 64
      %v1445 = vpop.permute.xlu0 %1444
      %1446 = vrot.lane.b32.xlu0 %v1348, 64
      %v1447 = vpop.permute.xlu0 %1446
      %1448 = vrot.lane.b32.xlu0 %v1349, 64
      %v1449 = vpop.permute.xlu0 %1448
      %1450 = vrot.lane.b32.xlu0 %v1350, 64
      %v1451 = vpop.permute.xlu0 %1450
      %1452 = vrot.lane.b32.xlu0 %v1351, 64
      %v1453 = vpop.permute.xlu0 %1452
      %1454 = vrot.lane.b32.xlu0 %v1352, 64
      %v1455 = vpop.permute.xlu0 %1454
      %1456 = vrot.lane.b32.xlu0 %v1353, 64
      %v1457 = vpop.permute.xlu0 %1456
      %1458 = vrot.lane.b32.xlu0 %v1354, 64
      %v1459 = vpop.permute.xlu0 %1458
      %1460 = vrot.lane.b32.xlu0 %v1355, 64
      %v1461 = vpop.permute.xlu0 %1460
      %1462 = vrot.lane.b32.xlu0 %v1356, 64
      %v1463 = vpop.permute.xlu0 %1462
      %1464 = vrot.lane.b32.xlu0 %v1357, 64
      %v1465 = vpop.permute.xlu0 %1464
      %1466 = vrot.lane.b32.xlu0 %v1358, 64
      %v1467 = vpop.permute.xlu0 %1466
      %1468 = vrot.lane.b32.xlu0 %v1359, 64
      %v1469 = vpop.permute.xlu0 %1468
      %1470 = vrot.lane.b32.xlu0 %v1360, 64
      %v1471 = vpop.permute.xlu0 %1470
      %1472 = vrot.lane.b32.xlu0 %v1361, 64
      %v1473 = vpop.permute.xlu0 %1472
      %v1490 = vadd.f32 %v1426, %v1443
      %v1491 = vadd.f32 %v1427, %v1445
      %v1492 = vadd.f32 %v1428, %v1447
      %v1493 = vadd.f32 %v1429, %v1449
      %v1494 = vadd.f32 %v1430, %v1451
      %v1495 = vadd.f32 %v1431, %v1453
      %v1496 = vadd.f32 %v1432, %v1455
      %v1497 = vadd.f32 %v1433, %v1457
      %v1498 = vadd.f32 %v1434, %v1459
      %v1499 = vadd.f32 %v1435, %v1461
      %v1500 = vadd.f32 %v1436, %v1463
      %v1501 = vadd.f32 %v1437, %v1465
      %v1502 = vadd.f32 %v1438, %v1467
      %v1503 = vadd.f32 %v1439, %v1469
      %v1504 = vadd.f32 %v1440, %v1471
      %v1505 = vadd.f32 %v1441, %v1473
      %1506 = vrot.lane.b32.xlu0 %v1346, 32
      %v1507 = vpop.permute.xlu0 %1506
      %1508 = vrot.lane.b32.xlu0 %v1347, 32
      %v1509 = vpop.permute.xlu0 %1508
      %1510 = vrot.lane.b32.xlu0 %v1348, 32
      %v1511 = vpop.permute.xlu0 %1510
      %1512 = vrot.lane.b32.xlu0 %v1349, 32
      %v1513 = vpop.permute.xlu0 %1512
      %1514 = vrot.lane.b32.xlu0 %v1350, 32
      %v1515 = vpop.permute.xlu0 %1514
      %1516 = vrot.lane.b32.xlu0 %v1351, 32
      %v1517 = vpop.permute.xlu0 %1516
      %1518 = vrot.lane.b32.xlu0 %v1352, 32
      %v1519 = vpop.permute.xlu0 %1518
      %1520 = vrot.lane.b32.xlu0 %v1353, 32
      %v1521 = vpop.permute.xlu0 %1520
      %1522 = vrot.lane.b32.xlu0 %v1354, 32
      %v1523 = vpop.permute.xlu0 %1522
      %1524 = vrot.lane.b32.xlu0 %v1355, 32
      %v1525 = vpop.permute.xlu0 %1524
      %1526 = vrot.lane.b32.xlu0 %v1356, 32
      %v1527 = vpop.permute.xlu0 %1526
      %1528 = vrot.lane.b32.xlu0 %v1357, 32
      %v1529 = vpop.permute.xlu0 %1528
      %1530 = vrot.lane.b32.xlu0 %v1358, 32
      %v1531 = vpop.permute.xlu0 %1530
      %1532 = vrot.lane.b32.xlu0 %v1359, 32
      %v1533 = vpop.permute.xlu0 %1532
      %1534 = vrot.lane.b32.xlu0 %v1360, 32
      %v1535 = vpop.permute.xlu0 %1534
      %1536 = vrot.lane.b32.xlu0 %v1361, 32
      %v1537 = vpop.permute.xlu0 %1536
      %v1554 = vadd.f32 %v1490, %v1507
      %v1555 = vadd.f32 %v1491, %v1509
      %v1556 = vadd.f32 %v1492, %v1511
      %v1557 = vadd.f32 %v1493, %v1513
      %v1558 = vadd.f32 %v1494, %v1515
      %v1559 = vadd.f32 %v1495, %v1517
      %v1560 = vadd.f32 %v1496, %v1519
      %v1561 = vadd.f32 %v1497, %v1521
      %v1562 = vadd.f32 %v1498, %v1523
      %v1563 = vadd.f32 %v1499, %v1525
      %v1564 = vadd.f32 %v1500, %v1527
      %v1565 = vadd.f32 %v1501, %v1529
      %v1566 = vadd.f32 %v1502, %v1531
      %v1567 = vadd.f32 %v1503, %v1533
      %v1568 = vadd.f32 %v1504, %v1535
      %v1569 = vadd.f32 %v1505, %v1537
      %v1570 = vlaneseq
      %v1571 = vshrl.u32 %v1570, 7
      %v1572 = vadd.s32 %v1571, 8
      %v1573 = vadd.s32 %v1571, 16
      %v1574 = vld [vmem:[%s572] sm:$0x1]
      %v1575 = vlaneseq
      %v1576 = vshrl.u32 %v1575, 7
      %v1577 = vsub.s32 0, %v1576
      %v1578 = vrot.slane %v1574, %v1577
      %vm1579 = vcmp.eq.s32.totalorder %v1571, %v1578
      %vm1580 = vcmp.eq.s32.totalorder %v1572, %v1578
      %vm1581 = vcmp.eq.s32.totalorder %v1573, %v1578
      %v1582 = vsel %vm1579, 1.0, 0.0
      %v1583 = vsel %vm1580, 1.0, 0.0
      %v1584 = vsel %vm1581, 1.0, 0.0
      %v1585 = vpack.c.bf16 %v1583, %v1582
      %v1586 = vpack.c.bf16 %v1584, %v1584
      %v1587 = vld [vmem:[#allocation4] sm:$0xff]
      %v1588 = vld [vmem:[#allocation4 + $0x8] sm:$0xff]
      %v1589 = vld [vmem:[#allocation4 + $0x10] sm:$0xff]
      %v1590 = vpack.c.bf16 %v1555, %v1554
      %v1591 = vpack.c.bf16 %v1557, %v1556
      %v1592 = vpack.c.bf16 %v1559, %v1558
      %v1593 = vpack.c.bf16 %v1561, %v1560
      %v1594 = vpack.c.bf16 %v1563, %v1562
      %v1595 = vpack.c.bf16 %v1565, %v1564
      %v1596 = vpack.c.bf16 %v1567, %v1566
      %v1597 = vpack.c.bf16 %v1569, %v1568
      %1598 = vmatprep.subr.bf16.mxu0 0
      %1599 = vmatpush1.bf16.msra.mxu0 %v1597
      %1600 = vmatprep.subr.bf16.mxu0 0
      %1601 = vmatpush1.bf16.msra.mxu0 %v1596
      %1602 = vmatprep.subr.bf16.mxu0 0
      %1603 = vmatpush1.bf16.msra.mxu0 %v1595
      %1604 = vmatprep.subr.bf16.mxu0 0
      %1605 = vmatpush1.bf16.msra.mxu0 %v1594
      %1606 = vmatprep.subr.bf16.mxu0 0
      %1607 = vmatpush1.bf16.msra.mxu0 %v1593
      %1608 = vmatprep.subr.bf16.mxu0 0
      %1609 = vmatpush1.bf16.msra.mxu0 %v1592
      %1610 = vmatprep.subr.bf16.mxu0 0
      %1611 = vmatpush1.bf16.msra.mxu0 %v1591
      %1612 = vmatprep.subr.bf16.mxu0 0
      %1613 = vmatpush1.bf16.msra.mxu0 %v1590
      %1614 = vmatprep.subr.bf16.mxu0 0
      %1615 = vmatpush2.bf16.msra.mxu0 0
      %1616 = vmatprep.subr.bf16.mxu0 0
      %1617 = vmatpush2.bf16.msra.mxu0 0
      %1618 = vmatprep.subr.bf16.mxu0 0
      %1619 = vmatpush2.bf16.msra.mxu0 0
      %1620 = vmatprep.subr.bf16.mxu0 0
      %1621 = vmatpush2.bf16.msra.mxu0 0
      %1622 = vmatprep.subr.bf16.mxu0 0
      %1623 = vmatpush2.bf16.msra.mxu0 0
      %1624 = vmatprep.subr.bf16.mxu0 0
      %1625 = vmatpush2.bf16.msra.mxu0 0
      %1626 = vmatprep.subr.bf16.mxu0 0
      %1627 = vmatpush2.bf16.msra.mxu0 0
      %1628 = vmatprep.subr.bf16.mxu0 0
      %1629 = vmatpush2.bf16.msra.mxu0 0
      %1630 = vmatprep.mubr.bf16.mxu0 0
      %1631 = vmatmul.mubr.bf16.gmra.mxu0 %v1585
      %v1632 = vpop.f32.mrf.mxu0
      %v1633 = vadd.f32 0.0, %v1632
      %v1634 = vpop.f32.mrf.mxu0
      %v1635 = vpop.f32.mrf.mxu0
      %v1636 = vadd.f32 0.0, %v1635
      %v1637 = vpop.f32.mrf.mxu0
      %1638 = vmatprep.mubr.bf16.mxu0 0
      %1639 = vmatmul.mubr.bf16.gmra.mxu0 %v1586
      %v1640 = vpop.f32.mrf.mxu0
      %v1641 = vadd.f32 0.0, %v1640
      %v1642 = vpop.f32.mrf.mxu0
      %v1643 = vpop.f32.mrf.mxu0
      %v1644 = vpop.f32.mrf.mxu0
      %1645 = vdwg.mxu0
      %v1646 = vadd.f32 %v1587, %v1633
      %v1647 = vadd.f32 %v1588, %v1636
      %v1648 = vadd.f32 %v1589, %v1641
      %1649 = vst.msk [vmem:[#allocation4] sm:$0xff] %vm976, %v1646
      %1650 = vst.msk [vmem:[#allocation4 + $0x8] sm:$0xff] %vm976, %v1647
      %1651 = vst.msk [vmem:[#allocation4 + $0x10] sm:$0xff] %vm976, %v1648
      // Predicated region
      $region85: #{tpu_custom_call.1} parent=75 // pred_check
        %p1652 = pneg %p597
      $region86: #{tpu_custom_call.1} parent=75 // pred_check_branch
        %1654 = sbr.rel (%p1652) target = $region88
      $region87: #{tpu_custom_call.1} parent=75 // pred_region
        %v1655 = vld [vmem:[#allocation3] sm:$0xf]
        %v1656 = vld [vmem:[#allocation3 + $0x4] sm:$0xf]
        %v1657 = vld [vmem:[#allocation3 + $0x8] sm:$0xf]
        %v1658 = vld [vmem:[%s591] sm:$0xf]
        %v1659 = vld [vmem:[%s591 + $0x4] sm:$0xf]
        %v1660 = vld [vmem:[%s591 + $0x8] sm:$0xf]
        %v1661 = vld [vmem:[%s591 + $0xc] sm:$0xf]
        %v1662 = vld [vmem:[%s594] sm:$0x1]
        %v1664 = vlaneseq
        %v1665 = vshrl.u32 %v1664, 7
        %v1666 = vsub.s32 0, %v1665
        %v1667 = vrot.slane %v1662, %v1666
        %v1672 = vunpack.c.l.b16 %v1655
        %v1673 = vunpack.c.l.b16 %v1656
        %v1674 = vunpack.c.l.b16 %v1657
        %v1675 = vpack.c.b16 %v1673, %v1672
        %v1676 = vpack.c.b16 %v1674, %v1674
        %v1681 = vunpack.c.l.b16 %v1658
        %v1682 = vunpack.c.l.b16 %v1659
        %v1683 = vunpack.c.l.b16 %v1660
        %v1684 = vunpack.c.l.b16 %v1661
        %v1685 = vpack.c.b16 %v1682, %v1681
        %v1686 = vpack.c.b16 %v1684, %v1683
        %v1690 = vsel %vm976, %v1675, 0
        %v1693 = vsel %vm976, %v1676, 0
        %1695 = vmatprep.subr.bf16.mxu0 0
        %1696 = vmatpush1.bf16.msra.mxu0 0
        %1697 = vmatprep.subr.bf16.mxu0 0
        %1698 = vmatpush1.bf16.msra.mxu0 0
        %1699 = vmatprep.subr.bf16.mxu0 0
        %1700 = vmatpush1.bf16.msra.mxu0 0
        %1701 = vmatprep.subr.bf16.mxu0 0
        %1702 = vmatpush1.bf16.msra.mxu0 0
        %1703 = vmatprep.subr.bf16.mxu0 0
        %1704 = vmatpush1.bf16.msra.mxu0 0
        %1705 = vmatprep.subr.bf16.mxu0 0
        %1706 = vmatpush1.bf16.msra.mxu0 0
        %1707 = vmatprep.subr.bf16.mxu0 0
        %1708 = vmatpush1.bf16.msra.mxu0 %v1686
        %1709 = vmatprep.subr.bf16.mxu0 0
        %1710 = vmatpush1.bf16.msra.mxu0 %v1685
        %1711 = vmatprep.subr.bf16.mxu0 0
        %1712 = vmatpush2.bf16.msra.mxu0 0
        %1713 = vmatprep.subr.bf16.mxu0 0
        %1714 = vmatpush2.bf16.msra.mxu0 0
        %1715 = vmatprep.subr.bf16.mxu0 0
        %1716 = vmatpush2.bf16.msra.mxu0 0
        %1717 = vmatprep.subr.bf16.mxu0 0
        %1718 = vmatpush2.bf16.msra.mxu0 0
        %1719 = vmatprep.subr.bf16.mxu0 0
        %1720 = vmatpush2.bf16.msra.mxu0 0
        %1721 = vmatprep.subr.bf16.mxu0 0
        %1722 = vmatpush2.bf16.msra.mxu0 0
        %1723 = vmatprep.subr.bf16.mxu0 0
        %1724 = vmatpush2.bf16.msra.mxu0 0
        %1725 = vmatprep.subr.bf16.mxu0 0
        %1726 = vmatpush2.bf16.msra.mxu0 0
        %1727 = vmatprep.mubr.bf16.mxu0 0
        %1728 = vmatmul.mubr.bf16.gmra.mxu0 %v1690
        %v1729 = vpop.f32.mrf.mxu0
        %v1730 = vadd.f32 %v1667, %v1729
        %v1731 = vpop.f32.mrf.mxu0
        %v1732 = vpop.f32.mrf.mxu0
        %v1733 = vadd.f32 %v1667, %v1732
        %v1734 = vpop.f32.mrf.mxu0
        %1735 = vmatprep.mubr.bf16.mxu0 0
        %1736 = vmatmul.mubr.bf16.gmra.mxu0 %v1693
        %v1737 = vpop.f32.mrf.mxu0
        %v1738 = vadd.f32 %v1667, %v1737
        %v1739 = vpop.f32.mrf.mxu0
        %v1740 = vpop.f32.mrf.mxu0
        %v1741 = vpop.f32.mrf.mxu0
        %1742 = vdwg.mxu0
        %v1743 = vld [vmem:[#allocation4] sm:$0xff]
        %v1744 = vld [vmem:[#allocation4 + $0x8] sm:$0xff]
        %v1745 = vld [vmem:[#allocation4 + $0x10] sm:$0xff]
        %v1746 = vadd.f32 %v1743, %v1730
        %v1747 = vadd.f32 %v1744, %v1733
        %v1748 = vadd.f32 %v1745, %v1738
        %p1749 = scmp.eq.s32.totalorder %s31, 1
        %v1750 = vmax.f32 %v1746, 0.0
        %v1751 = vmax.f32 %v1747, 0.0
        %v1752 = vmax.f32 %v1748, 0.0
        %s1753 = scalar_select %p1749, 1, 0
        %v1754 = vstv %s1753
        %vm1755 = vcmp.eq.s32.totalorder %v1754, 1
        %v1756 = vsel %vm1755, %v1746, %v1750
        %v1757 = vsel %vm1755, %v1747, %v1751
        %v1758 = vsel %vm1755, %v1748, %v1752
        %1759 = vst.msk [vmem:[#allocation2] sm:$0xff] %vm976, %v1756
        %1760 = vst.msk [vmem:[#allocation2 + $0x8] sm:$0xff] %vm976, %v1757
        %1761 = vst.msk [vmem:[#allocation2 + $0x10] sm:$0xff] %vm976, %v1758
        // Predicated region
        $region89: #{tpu_custom_call.1} parent=87 // pred_check
          %p1762 = pneg %p1749
        $region90: #{tpu_custom_call.1} parent=87 // pred_check_branch
          %1764 = sbr.rel (%p1762) target = $region92
        $region91: #{tpu_custom_call.1} parent=87 // pred_region
          %v1765 = vld [vmem:[%s5] sm:$0x1]
          %v1766 = vlaneseq
          %v1767 = vshrl.u32 %v1766, 7
          %v1768 = vsub.s32 0, %v1767
          %v1769 = vrot.slane %v1765, %v1768
          %vm1770 = vcmp.eq.s32.totalorder %v1571, %v1769
          %v1771 = vsel %vm1770, 1.0, 0.0
          %v1772 = vpack.c.bf16 %v1771, %v1771
          %v1773 = vpack.c.bf16 %v1747, %v1746
          %v1774 = vpack.c.bf16 %v1748, %v1748
          %v1776 = vsel %vm770, %v1772, 0
          %v1779 = vsel %vm795, %v1774, 0
          %1781 = vmatprep.subr.bf16.mxu0 0
          %1782 = vmatpush1.bf16.msra.mxu0 0
          %1783 = vmatprep.subr.bf16.mxu0 0
          %1784 = vmatpush1.bf16.msra.mxu0 0
          %1785 = vmatprep.subr.bf16.mxu0 0
          %1786 = vmatpush1.bf16.msra.mxu0 0
          %1787 = vmatprep.subr.bf16.mxu0 0
          %1788 = vmatpush1.bf16.msra.mxu0 0
          %1789 = vmatprep.subr.bf16.mxu0 0
          %1790 = vmatpush1.bf16.msra.mxu0 0
          %1791 = vmatprep.subr.bf16.mxu0 0
          %1792 = vmatpush1.bf16.msra.mxu0 0
          %1793 = vmatprep.subr.bf16.mxu0 0
          %1794 = vmatpush1.bf16.msra.mxu0 %v1779
          %1795 = vmatprep.subr.bf16.mxu0 0
          %1796 = vmatpush1.bf16.msra.mxu0 %v1773
          %1797 = vmatprep.subr.bf16.mxu0 0
          %1798 = vmatpush2.bf16.msra.mxu0 0
          %1799 = vmatprep.subr.bf16.mxu0 0
          %1800 = vmatpush2.bf16.msra.mxu0 0
          %1801 = vmatprep.subr.bf16.mxu0 0
          %1802 = vmatpush2.bf16.msra.mxu0 0
          %1803 = vmatprep.subr.bf16.mxu0 0
          %1804 = vmatpush2.bf16.msra.mxu0 0
          %1805 = vmatprep.subr.bf16.mxu0 0
          %1806 = vmatpush2.bf16.msra.mxu0 0
          %1807 = vmatprep.subr.bf16.mxu0 0
          %1808 = vmatpush2.bf16.msra.mxu0 0
          %1809 = vmatprep.subr.bf16.mxu0 0
          %1810 = vmatpush2.bf16.msra.mxu0 0
          %1811 = vmatprep.subr.bf16.mxu0 0
          %1812 = vmatpush2.bf16.msra.mxu0 0
          %1813 = vmatprep.mubr.bf16.mxu0 0
          %1814 = vmatmul.mubr.bf16.gmra.mxu0 %v1776
          %v1815 = vpop.f32.mrf.mxu0
          %v1816 = vadd.f32 0.0, %v1815
          %v1817 = vpop.f32.mrf.mxu0
          %v1818 = vpop.f32.mrf.mxu0
          %v1819 = vpop.f32.mrf.mxu0
          %1820 = vdwg.mxu0
          %v1821 = vpack.c.bf16 %v1816, %v1816
          %v1822 = vld [vmem:[%s10] sm:$0xf]
          %v1823 = vld [vmem:[%s10 + $0x4] sm:$0xf]
          %v1824 = vld [vmem:[%s10 + $0x8] sm:$0xf]
          %v1825 = vld [vmem:[%s10 + $0xc] sm:$0xf]
          %v1826 = vld [vmem:[%s11] sm:$0x1]
          %v1828 = vlaneseq
          %v1829 = vshrl.u32 %v1828, 7
          %v1830 = vsub.s32 0, %v1829
          %v1831 = vrot.slane %v1826, %v1830
          %v1837 = vunpack.c.l.b16 %v1822
          %v1838 = vunpack.c.l.b16 %v1823
          %v1839 = vunpack.c.l.b16 %v1824
          %v1840 = vunpack.c.l.b16 %v1825
          %v1841 = vpack.c.b16 %v1838, %v1837
          %v1842 = vpack.c.b16 %v1840, %v1839
          %v1846 = vsel %vm976, %v1821, 0
          %1848 = vmatprep.subr.bf16.mxu0 0
          %1849 = vmatpush1.bf16.msra.mxu0 0
          %1850 = vmatprep.subr.bf16.mxu0 0
          %1851 = vmatpush1.bf16.msra.mxu0 0
          %1852 = vmatprep.subr.bf16.mxu0 0
          %1853 = vmatpush1.bf16.msra.mxu0 0
          %1854 = vmatprep.subr.bf16.mxu0 0
          %1855 = vmatpush1.bf16.msra.mxu0 0
          %1856 = vmatprep.subr.bf16.mxu0 0
          %1857 = vmatpush1.bf16.msra.mxu0 0
          %1858 = vmatprep.subr.bf16.mxu0 0
          %1859 = vmatpush1.bf16.msra.mxu0 0
          %1860 = vmatprep.subr.bf16.mxu0 0
          %1861 = vmatpush1.bf16.msra.mxu0 %v1842
          %1862 = vmatprep.subr.bf16.mxu0 0
          %1863 = vmatpush1.bf16.msra.mxu0 %v1841
          %1864 = vmatprep.subr.bf16.mxu0 0
          %1865 = vmatpush2.bf16.msra.mxu0 0
          %1866 = vmatprep.subr.bf16.mxu0 0
          %1867 = vmatpush2.bf16.msra.mxu0 0
          %1868 = vmatprep.subr.bf16.mxu0 0
          %1869 = vmatpush2.bf16.msra.mxu0 0
          %1870 = vmatprep.subr.bf16.mxu0 0
          %1871 = vmatpush2.bf16.msra.mxu0 0
          %1872 = vmatprep.subr.bf16.mxu0 0
          %1873 = vmatpush2.bf16.msra.mxu0 0
          %1874 = vmatprep.subr.bf16.mxu0 0
          %1875 = vmatpush2.bf16.msra.mxu0 0
          %1876 = vmatprep.subr.bf16.mxu0 0
          %1877 = vmatpush2.bf16.msra.mxu0 0
          %1878 = vmatprep.subr.bf16.mxu0 0
          %1879 = vmatpush2.bf16.msra.mxu0 0
          %1880 = vmatprep.mubr.bf16.mxu0 0
          %1881 = vmatmul.mubr.bf16.gmra.mxu0 %v1846
          %v1882 = vpop.f32.mrf.mxu0
          %v1883 = vadd.f32 %v1831, %v1882
          %v1884 = vpop.f32.mrf.mxu0
          %v1885 = vpop.f32.mrf.mxu0
          %v1886 = vpop.f32.mrf.mxu0
          %1887 = vdwg.mxu0
          %v1888 = vmax.f32 %v1883, 0.0
          %v1889 = vld [vmem:[%s12] sm:$0x1]
          %v1891 = vlaneseq
          %v1892 = vshrl.u32 %v1891, 7
          %v1893 = vsub.s32 0, %v1892
          %v1894 = vrot.slane %v1889, %v1893
          %v1896 = vmul.f32 %v1888, %v1894
          %vm1897 = vcmask 130048
          %v1898 = vsel %vm1897, %v1896, 0.0
          %1899 = vadd.xlane.f32.xlu0 %v1898
          %v1900 = vpop.xlane.xlu0 %1899
          %v1901 = vld [vmem:[#allocation5] sm:$0x1]
          %v1903 = vlaneseq
          %v1904 = vshrl.u32 %v1903, 7
          %v1905 = vsub.s32 0, %v1904
          %v1906 = vrot.slane %v1901, %v1905
          %v1908 = vadd.f32 %v1900, %v1906
          %vm1909 = vcmask 7168
          %1910 = vst.msk [vmem:[%s14] sm:$0xff] %vm1909, %v1908
        $region92: #{tpu_custom_call.1} parent=87 // pred_fallthru
          _
      $region88: #{tpu_custom_call.1} parent=75 // pred_fallthru
        _
      // Predicated region
      $region93: #{tpu_custom_call.1} parent=75 // pred_check
        %p1911 = pneg %p386
      $region94: #{tpu_custom_call.1} parent=75 // pred_check_branch
        %1913 = sbr.rel (%p1911) target = $region96
      $region95: #{tpu_custom_call.1} parent=75 // pred_region
        _
      $region96: #{tpu_custom_call.1} parent=75 // pred_fallthru
        _
      // Predicated region
      $region97: #{tpu_custom_call.1} parent=75 // pred_check
        %p1914 = pneg %p386
      $region98: #{tpu_custom_call.1} parent=75 // pred_check_branch
        %1916 = sbr.rel (%p1914) target = $region100
      $region99: #{tpu_custom_call.1} parent=75 // pred_region
        _
      $region100: #{tpu_custom_call.1} parent=75 // pred_fallthru
        _
    $region76: #{tpu_custom_call.1} parent=5 // pred_fallthru
      _
    %p1917 = scmp.le.s32.totalorder 2, %s22
    // Predicated region
    $region101: #{tpu_custom_call.1} parent=5 // pred_check
      %p1918 = pneg %p1917
    $region102: #{tpu_custom_call.1} parent=5 // pred_check_branch
      %1920 = sbr.rel (%p1918) target = $region104
    $region103: #{tpu_custom_call.1} parent=5 // pred_region
      %s1921 = ssub.s32 %s22, 2
    $region104: #{tpu_custom_call.1} parent=5 // pred_fallthru
      _
  $region6: #{tpu_custom_call.1} parent=0 // loop_footer
    %s26 = sadd.s32 1, %s22
  $region7: #{tpu_custom_call.1} parent=0 // loop_footer_branch
    %21 = sbr.rel target = $region3
  $region8: #{tpu_custom_call.1} parent=0 // loop_exit
    _

</llo_original>
